<compile_context>
chip_gen: v5e
topology: v5e:2x2
jax: 0.10.0
libtpu: 0.0.40
codegen_flags: <defaults>
</compile_context>

<pallas_src>
import functools
import math

import jax
import jax.numpy as jnp
from jax.experimental import pallas as pl
from jax.experimental.pallas import tpu as pltpu


def self_attention_kernel(x_ref, qkvw_ref, mats_ref, vecs_ref, o_ref, *,
                          seq_len, n_batch):
    """One batch shard. x_ref block: (1, C, n_batch*seq_len), S lane-dense."""
    x = x_ref[0]                               # (C, Bs*S) f32
    C = x.shape[0]
    bf16 = jnp.bfloat16

    # Packed per-channel bias table. LayerNorm affines are already folded into
    # the following linear layers; the 1/sqrt(C) scale is folded into Q rows.
    vecs = vecs_ref[...]                       # (3C, 4) f32
    qkv_b = vecs[:, 0:1]                       # (3C, 1)
    out_b = vecs[0:C, 1:2]                     # (C, 1)
    b1 = vecs[0:C, 2:3]
    b2 = vecs[0:C, 3:4]

    def ln_normalize(v, eps=1e-5):
        # Normalize over the channel (sublane) axis; affine folded away.
        mu = jnp.mean(v, axis=0, keepdims=True)
        var = jnp.mean((v - mu) ** 2, axis=0, keepdims=True)
        return (v - mu) * jax.lax.rsqrt(var + eps)

    # ---- pre-attention LayerNorm + fused QKV projection on the whole slab ----
    x_ln = ln_normalize(x)                                             # (C, BS)
    qkv = jnp.dot(qkvw_ref[...], x_ln.astype(bf16),
                  preferred_element_type=jnp.float32) + qkv_b          # (3C, BS)
    q = qkv[0:C, :].astype(bf16)               # attention scale pre-folded
    k = qkv[C:2 * C, :].astype(bf16)
    v = qkv[2 * C:3 * C, :].astype(bf16)

    # ---- single-head attention, strictly per batch image (never mixed) ----
    ctx_parts = []
    for b in range(n_batch):                   # static unroll, n_batch tiny
        lo, hi = b * seq_len, (b + 1) * seq_len
        qb, kb, vb = q[:, lo:hi], k[:, lo:hi], v[:, lo:hi]             # (C, S)
        # Transposed scores (S_k, S_q): softmax stats come out as (1, S_q).
        s_t = jax.lax.dot_general(kb, qb, (((0,), (0,)), ((), ())),
                                  preferred_element_type=jnp.float32)
        m = jnp.max(s_t, axis=0, keepdims=True)
        # Single pass over the S x S slab: sub-max, exp, bf16 cast fused; the
        # key-sum is accumulated in f32 so numerator/denominator match.
        p16 = jnp.exp(s_t - m).astype(bf16)                            # (Sk, Sq)
        inv_l = pl.reciprocal(
            jnp.sum(p16, axis=0, keepdims=True, dtype=jnp.float32),
            approx=True)                                               # (1, Sq)
        ctx_b = jnp.dot(vb, p16, preferred_element_type=jnp.float32) * inv_l
        ctx_parts.append(ctx_b)                                        # (C, S)
    ctx = ctx_parts[0] if n_batch == 1 else jnp.concatenate(ctx_parts, axis=1)

    # ---- output projection + residual ----
    out_w = mats_ref[0]                        # (C, C) bf16
    w1 = mats_ref[1]                           # ffLN affine pre-folded
    w2 = mats_ref[2]
    ctx = jnp.dot(out_w, ctx.astype(bf16),
                  preferred_element_type=jnp.float32) + out_b
    av = ctx + x                                                       # (C, BS)

    # ---- feed-forward: LN -> Linear -> GELU -> Linear, + residual ----
    h = ln_normalize(av)
    h = jnp.dot(w1, h.astype(bf16), preferred_element_type=jnp.float32) + b1
    # tanh GELU goes to the (idle) EUP slot; well within the bf16 tolerance.
    h = jax.nn.gelu(h, approximate=True)
    h = jnp.dot(w2, h.astype(bf16), preferred_element_type=jnp.float32) + b2
    o_ref[0] = h + av


def _num_batch_shards(batch):
    # v7x has 2 TensorCores/chip: give each core half the batch via a parallel
    # grid axis.  Single-TC chips (v5e/v6e) collapse the grid entirely to drop
    # the per-grid-step pipeline overhead.  Fall back to the collapsed grid if
    # the device kind cannot be determined.
    try:
        kind = jax.devices()[0].device_kind.lower()
    except Exception:
        kind = ""
    if ("v7" in kind or "7x" in kind) and batch % 2 == 0:
        return 2
    return 1


def self_attention_pallas(x, params):
    B, C, H, W = x.shape
    S = H * W
    num_shards = _num_batch_shards(B)
    Bs = B // num_shards
    scale = 1.0 / math.sqrt(C)

    # ---- constant-fold parameter transforms (free under jit) ----
    ln_w = params["ln_w"].astype(jnp.float32)
    ln_b = params["ln_b"].astype(jnp.float32)
    in_w = params["in_w"].astype(jnp.float32)
    in_b = params["in_b"].astype(jnp.float32)
    ffln_w = params["ffln_w"].astype(jnp.float32)
    ffln_b = params["ffln_b"].astype(jnp.float32)
    w1 = params["w1"].astype(jnp.float32)
    b1 = params["b1"].astype(jnp.float32)

    # Fold pre-attention LayerNorm affine into the fused QKV projection and the
    # 1/sqrt(C) attention scale into the Q rows.
    qkv_w = in_w * ln_w[None, :]
    qkv_b = in_w @ ln_b + in_b
    qkv_w = qkv_w.at[:C].multiply(scale)
    qkv_b = qkv_b.at[:C].multiply(scale)

    # Fold the FF LayerNorm affine into the first FF linear.
    w1_f = w1 * ffln_w[None, :]
    b1_f = w1 @ ffln_b + b1

    # Pre-cast MXU weights to bf16 (halves weight DMA, removes in-kernel casts).
    qkv_w16 = qkv_w.astype(jnp.bfloat16)                               # (3C, C)
    mats16 = jnp.stack(
        [params["out_w"].astype(jnp.float32), w1_f,
         params["w2"].astype(jnp.float32)]).astype(jnp.bfloat16)       # (3, C, C)

    def col(v):
        v = jnp.reshape(v, (-1,)).astype(jnp.float32)
        return jnp.pad(v, (0, 3 * C - v.shape[0]))

    vecs = jnp.stack([col(qkv_b), col(params["out_b"]), col(b1_f),
                      col(params["b2"])], axis=1)                      # (3C, 4)

    # ---- lane-pack the batch shard: (num_shards, C, Bs*S), S lane-dense ----
    x_lane = (x.astype(jnp.float32)
               .reshape(num_shards, Bs, C, S)
               .transpose(0, 2, 1, 3)
               .reshape(num_shards, C, Bs * S))

    kernel = functools.partial(self_attention_kernel, seq_len=S, n_batch=Bs)
    out_lane = pl.pallas_call(
        kernel,
        out_shape=jax.ShapeDtypeStruct((num_shards, C, Bs * S), jnp.float32),
        grid_spec=pltpu.PrefetchScalarGridSpec(
            num_scalar_prefetch=0,
            grid=(num_shards,),
            in_specs=[
                pl.BlockSpec((1, C, Bs * S), lambda s: (s, 0, 0)),
                pl.BlockSpec((3 * C, C), lambda s: (0, 0)),
                pl.BlockSpec((3, C, C), lambda s: (0, 0, 0)),
                pl.BlockSpec((3 * C, 4), lambda s: (0, 0)),
            ],
            out_specs=pl.BlockSpec((1, C, Bs * S), lambda s: (s, 0, 0)),
        ),
        compiler_params=pltpu.CompilerParams(
            dimension_semantics=("parallel",),
            # Working set is ~1.5 MiB; keep the scoped-VMEM reservation tight.
            # TODO(synk): for S large enough that the f32 (S,S) scores + bf16 p
            # slabs approach pltpu.get_tpu_info().vmem_capacity_bytes, switch
            # to a KV-tiled online-softmax (flash) grid axis instead.
            vmem_limit_bytes=8 * 1024 * 1024,
        ),
    )(x_lane, qkv_w16, mats16, vecs)

    # Undo the lane packing: (num_shards, C, Bs*S) -> NCHW.
    return (out_lane.reshape(num_shards, C, Bs, S)
                    .transpose(0, 2, 1, 3)
                    .reshape(B, C, H, W))


def reference(x, params):
    """Pure-JAX f32 reference of the intended torch semantics."""
    B, C, H, W = x.shape
    S = H * W
    xs = jnp.transpose(x.reshape(B, C, S), (0, 2, 1))          # (B, S, C)

    def ln(v, w, b, eps=1e-5):
        mu = v.mean(-1, keepdims=True)
        var = ((v - mu) ** 2).mean(-1, keepdims=True)
        return (v - mu) / jnp.sqrt(var + eps) * w + b

    x_ln = ln(xs, params["ln_w"], params["ln_b"])
    qkv = x_ln @ params["in_w"].T + params["in_b"]
    q, k, v = jnp.split(qkv, 3, axis=-1)
    scores = (q @ jnp.swapaxes(k, -1, -2)) / jnp.sqrt(C)
    attn = jax.nn.softmax(scores, axis=-1)
    ctx = attn @ v
    ctx = ctx @ params["out_w"].T + params["out_b"]
    av = ctx + xs
    h = ln(av, params["ffln_w"], params["ffln_b"])
    h = h @ params["w1"].T + params["b1"]
    h = jax.nn.gelu(h, approximate=False)
    h = h @ params["w2"].T + params["b2"]
    y = h + av
    return jnp.transpose(y, (0, 2, 1)).reshape(B, C, H, W)


def init_params(key, channels):
    C = channels
    ks = jax.random.split(key, 8)
    s = 0.02
    return {
        # nn.LayerNorm([channels])
        "ln_w": jnp.ones((C,), jnp.float32),
        "ln_b": jnp.zeros((C,), jnp.float32),
        # nn.MultiheadAttention(embed_dim=C, num_heads=1)
        "in_w": s * jax.random.normal(ks[0], (3 * C, C), jnp.float32),
        "in_b": s * jax.random.normal(ks[1], (3 * C,), jnp.float32),
        "out_w": s * jax.random.normal(ks[2], (C, C), jnp.float32),
        "out_b": s * jax.random.normal(ks[3], (C,), jnp.float32),
        # ff_self: LayerNorm, Linear(C,C), GELU, Linear(C,C)
        "ffln_w": jnp.ones((C,), jnp.float32),
        "ffln_b": jnp.zeros((C,), jnp.float32),
        "w1": s * jax.random.normal(ks[4], (C, C), jnp.float32),
        "b1": s * jax.random.normal(ks[5], (C,), jnp.float32),
        "w2": s * jax.random.normal(ks[6], (C, C), jnp.float32),
        "b2": s * jax.random.normal(ks[7], (C,), jnp.float32),
    }


if __name__ == "__main__":
    B, channels, size = 2, 4, 16              # x: (2, 4, 16, 16), seq len = 256
    key = jax.random.PRNGKey(0)
    kx, kp = jax.random.split(key)
    x = jax.random.normal(kx, (B, channels, size, size), jnp.float32)
    params = init_params(kp, channels)

    fn = jax.jit(self_attention_pallas)
    out = jax.block_until_ready(fn(x, params))
    ref = jax.block_until_ready(reference(x, params))

    assert out.shape == (B, channels, size, size)
    # Tolerance relaxed vs pure-f32: the kernel feeds the MXU in bf16 (f32
    # accumulation), uses the EUP approx reciprocal and tanh GELU.
    assert jnp.allclose(out, ref, atol=1e-2, rtol=1e-2), (
        "mismatch vs reference, max abs err = %e"
        % float(jnp.max(jnp.abs(out - ref))))

    print("KERNEL_OK")
</pallas_src>

<mosaic_0001>
module attributes {stable_mosaic.version = 11 : i64} {
  func.func @self_attention_kernel(%arg0: i32, %arg1: memref<1x4x512xf32, #tpu.memory_space<vmem>>, %arg2: memref<12x4xbf16, #tpu.memory_space<vmem>>, %arg3: memref<3x4x4xbf16, #tpu.memory_space<vmem>>, %arg4: memref<12x4xf32, #tpu.memory_space<vmem>>, %arg5: memref<1x4x512xf32, #tpu.memory_space<vmem>>) attributes {dimension_semantics = [#tpu.dimension_semantics<parallel>], iteration_bounds = array<i64: 1>, scalar_prefetch = 0 : i64, scratch_operands = 0 : i64, tpu.core_type = #tpu.core_type<tc>, window_params = [{transform_indices = @transform_0, window_bounds = array<i64: 1, 4, 512>}, {pipeline_mode = #tpu.pipeline_mode<synchronous>, transform_indices = @transform_1, window_bounds = array<i64: 12, 4>}, {pipeline_mode = #tpu.pipeline_mode<synchronous>, transform_indices = @transform_2, window_bounds = array<i64: 3, 4, 4>}, {pipeline_mode = #tpu.pipeline_mode<synchronous>, transform_indices = @transform_3, window_bounds = array<i64: 12, 4>}, {transform_indices = @transform_4, window_bounds = array<i64: 1, 4, 512>}]} {
    %c0 = arith.constant 0 : index
    %c0_0 = arith.constant 0 : index
    %c0_1 = arith.constant 0 : index
    %0 = vector.load %arg1[%c0, %c0_0, %c0_1] : memref<1x4x512xf32, #tpu.memory_space<vmem>>, vector<1x4x512xf32>
    %1 = vector.shape_cast %0 : vector<1x4x512xf32> to vector<4x512xf32>
    %c0_2 = arith.constant 0 : index
    %c0_3 = arith.constant 0 : index
    %2 = vector.load %arg4[%c0_2, %c0_3] : memref<12x4xf32, #tpu.memory_space<vmem>>, vector<12x4xf32>
    %3 = vector.extract_strided_slice %2 {offsets = [0, 0], sizes = [12, 1], strides = [1, 1]} : vector<12x4xf32> to vector<12x1xf32>
    %4 = vector.extract_strided_slice %2 {offsets = [0, 1], sizes = [4, 1], strides = [1, 1]} : vector<12x4xf32> to vector<4x1xf32>
    %5 = vector.extract_strided_slice %2 {offsets = [0, 2], sizes = [4, 1], strides = [1, 1]} : vector<12x4xf32> to vector<4x1xf32>
    %6 = vector.extract_strided_slice %2 {offsets = [0, 3], sizes = [4, 1], strides = [1, 1]} : vector<12x4xf32> to vector<4x1xf32>
    %cst = arith.constant dense<0.000000e+00> : vector<512xf32>
    %7 = vector.multi_reduction <add>, %1, %cst [0] : vector<4x512xf32> to vector<512xf32>
    %8 = vector.shape_cast %7 : vector<512xf32> to vector<1x512xf32>
    %cst_4 = arith.constant 4.000000e+00 : f32
    %9 = vector.broadcast %cst_4 : f32 to vector<1x512xf32>
    %10 = arith.divf %8, %9 : vector<1x512xf32>
    %11 = vector.broadcast %10 : vector<1x512xf32> to vector<4x512xf32>
    %12 = arith.subf %1, %11 : vector<4x512xf32>
    %13 = arith.mulf %12, %12 : vector<4x512xf32>
    %cst_5 = arith.constant dense<0.000000e+00> : vector<512xf32>
    %14 = vector.multi_reduction <add>, %13, %cst_5 [0] : vector<4x512xf32> to vector<512xf32>
    %15 = vector.shape_cast %14 : vector<512xf32> to vector<1x512xf32>
    %cst_6 = arith.constant 4.000000e+00 : f32
    %16 = vector.broadcast %cst_6 : f32 to vector<1x512xf32>
    %17 = arith.divf %15, %16 : vector<1x512xf32>
    %18 = vector.broadcast %10 : vector<1x512xf32> to vector<4x512xf32>
    %19 = arith.subf %1, %18 : vector<4x512xf32>
    %cst_7 = arith.constant 9.99999974E-6 : f32
    %20 = vector.broadcast %cst_7 : f32 to vector<1x512xf32>
    %21 = arith.addf %17, %20 : vector<1x512xf32>
    %22 = math.rsqrt %21 : vector<1x512xf32>
    %23 = vector.broadcast %22 : vector<1x512xf32> to vector<4x512xf32>
    %24 = arith.mulf %19, %23 : vector<4x512xf32>
    %c0_8 = arith.constant 0 : index
    %c0_9 = arith.constant 0 : index
    %25 = vector.load %arg2[%c0_8, %c0_9] : memref<12x4xbf16, #tpu.memory_space<vmem>>, vector<12x4xbf16>
    %26 = arith.truncf %24 : vector<4x512xf32> to vector<4x512xbf16>
    %cst_10 = arith.constant dense<0.000000e+00> : vector<12x512xf32>
    %27 = tpu.matmul %25, %26, %cst_10 {dimension_numbers = #tpu.dot_dimension_numbers<[1], [0], [0], [1], [0, 0, 1, 1], [], []>} : vector<12x4xbf16>, vector<4x512xbf16>, vector<12x512xf32> -> vector<12x512xf32>
    %28 = vector.broadcast %3 : vector<12x1xf32> to vector<12x512xf32>
    %29 = arith.addf %27, %28 : vector<12x512xf32>
    %30 = vector.extract_strided_slice %29 {offsets = [0, 0], sizes = [4, 512], strides = [1, 1]} : vector<12x512xf32> to vector<4x512xf32>
    %31 = arith.truncf %30 : vector<4x512xf32> to vector<4x512xbf16>
    %32 = vector.extract_strided_slice %29 {offsets = [4, 0], sizes = [4, 512], strides = [1, 1]} : vector<12x512xf32> to vector<4x512xf32>
    %33 = arith.truncf %32 : vector<4x512xf32> to vector<4x512xbf16>
    %34 = vector.extract_strided_slice %29 {offsets = [8, 0], sizes = [4, 512], strides = [1, 1]} : vector<12x512xf32> to vector<4x512xf32>
    %35 = arith.truncf %34 : vector<4x512xf32> to vector<4x512xbf16>
    %36 = vector.extract_strided_slice %31 {offsets = [0, 0], sizes = [4, 256], strides = [1, 1]} : vector<4x512xbf16> to vector<4x256xbf16>
    %37 = vector.extract_strided_slice %33 {offsets = [0, 0], sizes = [4, 256], strides = [1, 1]} : vector<4x512xbf16> to vector<4x256xbf16>
    %38 = vector.extract_strided_slice %35 {offsets = [0, 0], sizes = [4, 256], strides = [1, 1]} : vector<4x512xbf16> to vector<4x256xbf16>
    %cst_11 = arith.constant dense<0.000000e+00> : vector<256x256xf32>
    %39 = tpu.matmul %37, %36, %cst_11 {dimension_numbers = #tpu.dot_dimension_numbers<[0], [0], [1], [1], [0, 1, 1, 1], [], []>} : vector<4x256xbf16>, vector<4x256xbf16>, vector<256x256xf32> -> vector<256x256xf32>
    %cst_12 = arith.constant dense<0xFF800000> : vector<256xf32>
    %40 = vector.multi_reduction <maximumf>, %39, %cst_12 [0] : vector<256x256xf32> to vector<256xf32>
    %41 = vector.shape_cast %40 : vector<256xf32> to vector<1x256xf32>
    %42 = vector.broadcast %41 : vector<1x256xf32> to vector<256x256xf32>
    %43 = arith.subf %39, %42 : vector<256x256xf32>
    %44 = math.exp %43 : vector<256x256xf32>
    %45 = arith.truncf %44 : vector<256x256xf32> to vector<256x256xbf16>
    %46 = arith.extf %45 : vector<256x256xbf16> to vector<256x256xf32>
    %cst_13 = arith.constant dense<0.000000e+00> : vector<256xf32>
    %47 = vector.multi_reduction <add>, %46, %cst_13 [0] : vector<256x256xf32> to vector<256xf32>
    %48 = vector.shape_cast %47 : vector<256xf32> to vector<1x256xf32>
    %49 = tpu.reciprocal %48 {approx = true} : vector<1x256xf32> -> vector<1x256xf32>
    %cst_14 = arith.constant dense<0.000000e+00> : vector<4x256xf32>
    %50 = tpu.matmul %38, %45, %cst_14 {dimension_numbers = #tpu.dot_dimension_numbers<[1], [0], [0], [1], [0, 0, 1, 1], [], []>} : vector<4x256xbf16>, vector<256x256xbf16>, vector<4x256xf32> -> vector<4x256xf32>
    %51 = vector.broadcast %49 : vector<1x256xf32> to vector<4x256xf32>
    %52 = arith.mulf %50, %51 : vector<4x256xf32>
    %53 = vector.extract_strided_slice %31 {offsets = [0, 256], sizes = [4, 256], strides = [1, 1]} : vector<4x512xbf16> to vector<4x256xbf16>
    %54 = vector.extract_strided_slice %33 {offsets = [0, 256], sizes = [4, 256], strides = [1, 1]} : vector<4x512xbf16> to vector<4x256xbf16>
    %55 = vector.extract_strided_slice %35 {offsets = [0, 256], sizes = [4, 256], strides = [1, 1]} : vector<4x512xbf16> to vector<4x256xbf16>
    %cst_15 = arith.constant dense<0.000000e+00> : vector<256x256xf32>
    %56 = tpu.matmul %54, %53, %cst_15 {dimension_numbers = #tpu.dot_dimension_numbers<[0], [0], [1], [1], [0, 1, 1, 1], [], []>} : vector<4x256xbf16>, vector<4x256xbf16>, vector<256x256xf32> -> vector<256x256xf32>
    %cst_16 = arith.constant dense<0xFF800000> : vector<256xf32>
    %57 = vector.multi_reduction <maximumf>, %56, %cst_16 [0] : vector<256x256xf32> to vector<256xf32>
    %58 = vector.shape_cast %57 : vector<256xf32> to vector<1x256xf32>
    %59 = vector.broadcast %58 : vector<1x256xf32> to vector<256x256xf32>
    %60 = arith.subf %56, %59 : vector<256x256xf32>
    %61 = math.exp %60 : vector<256x256xf32>
    %62 = arith.truncf %61 : vector<256x256xf32> to vector<256x256xbf16>
    %63 = arith.extf %62 : vector<256x256xbf16> to vector<256x256xf32>
    %cst_17 = arith.constant dense<0.000000e+00> : vector<256xf32>
    %64 = vector.multi_reduction <add>, %63, %cst_17 [0] : vector<256x256xf32> to vector<256xf32>
    %65 = vector.shape_cast %64 : vector<256xf32> to vector<1x256xf32>
    %66 = tpu.reciprocal %65 {approx = true} : vector<1x256xf32> -> vector<1x256xf32>
    %cst_18 = arith.constant dense<0.000000e+00> : vector<4x256xf32>
    %67 = tpu.matmul %55, %62, %cst_18 {dimension_numbers = #tpu.dot_dimension_numbers<[1], [0], [0], [1], [0, 0, 1, 1], [], []>} : vector<4x256xbf16>, vector<256x256xbf16>, vector<4x256xf32> -> vector<4x256xf32>
    %68 = vector.broadcast %66 : vector<1x256xf32> to vector<4x256xf32>
    %69 = arith.mulf %67, %68 : vector<4x256xf32>
    %70 = tpu.concatenate %52, %69 in 1 : vector<4x256xf32>, vector<4x256xf32> -> vector<4x512xf32>
    %c0_19 = arith.constant 0 : index
    %c0_20 = arith.constant 0 : index
    %c0_21 = arith.constant 0 : index
    %71 = vector.load %arg3[%c0_19, %c0_20, %c0_21] : memref<3x4x4xbf16, #tpu.memory_space<vmem>>, vector<1x4x4xbf16>
    %72 = vector.shape_cast %71 : vector<1x4x4xbf16> to vector<4x4xbf16>
    %c1 = arith.constant 1 : index
    %c0_22 = arith.constant 0 : index
    %c0_23 = arith.constant 0 : index
    %73 = vector.load %arg3[%c1, %c0_22, %c0_23] : memref<3x4x4xbf16, #tpu.memory_space<vmem>>, vector<1x4x4xbf16>
    %74 = vector.shape_cast %73 : vector<1x4x4xbf16> to vector<4x4xbf16>
    %c2 = arith.constant 2 : index
    %c0_24 = arith.constant 0 : index
    %c0_25 = arith.constant 0 : index
    %75 = vector.load %arg3[%c2, %c0_24, %c0_25] : memref<3x4x4xbf16, #tpu.memory_space<vmem>>, vector<1x4x4xbf16>
    %76 = vector.shape_cast %75 : vector<1x4x4xbf16> to vector<4x4xbf16>
    %77 = arith.truncf %70 : vector<4x512xf32> to vector<4x512xbf16>
    %cst_26 = arith.constant dense<0.000000e+00> : vector<4x512xf32>
    %78 = tpu.matmul %72, %77, %cst_26 {dimension_numbers = #tpu.dot_dimension_numbers<[1], [0], [0], [1], [0, 0, 1, 1], [], []>} : vector<4x4xbf16>, vector<4x512xbf16>, vector<4x512xf32> -> vector<4x512xf32>
    %79 = vector.broadcast %4 : vector<4x1xf32> to vector<4x512xf32>
    %80 = arith.addf %78, %79 : vector<4x512xf32>
    %81 = arith.addf %80, %1 : vector<4x512xf32>
    %cst_27 = arith.constant dense<0.000000e+00> : vector<512xf32>
    %82 = vector.multi_reduction <add>, %81, %cst_27 [0] : vector<4x512xf32> to vector<512xf32>
    %83 = vector.shape_cast %82 : vector<512xf32> to vector<1x512xf32>
    %cst_28 = arith.constant 4.000000e+00 : f32
    %84 = vector.broadcast %cst_28 : f32 to vector<1x512xf32>
    %85 = arith.divf %83, %84 : vector<1x512xf32>
    %86 = vector.broadcast %85 : vector<1x512xf32> to vector<4x512xf32>
    %87 = arith.subf %81, %86 : vector<4x512xf32>
    %88 = arith.mulf %87, %87 : vector<4x512xf32>
    %cst_29 = arith.constant dense<0.000000e+00> : vector<512xf32>
    %89 = vector.multi_reduction <add>, %88, %cst_29 [0] : vector<4x512xf32> to vector<512xf32>
    %90 = vector.shape_cast %89 : vector<512xf32> to vector<1x512xf32>
    %cst_30 = arith.constant 4.000000e+00 : f32
    %91 = vector.broadcast %cst_30 : f32 to vector<1x512xf32>
    %92 = arith.divf %90, %91 : vector<1x512xf32>
    %93 = vector.broadcast %85 : vector<1x512xf32> to vector<4x512xf32>
    %94 = arith.subf %81, %93 : vector<4x512xf32>
    %cst_31 = arith.constant 9.99999974E-6 : f32
    %95 = vector.broadcast %cst_31 : f32 to vector<1x512xf32>
    %96 = arith.addf %92, %95 : vector<1x512xf32>
    %97 = math.rsqrt %96 : vector<1x512xf32>
    %98 = vector.broadcast %97 : vector<1x512xf32> to vector<4x512xf32>
    %99 = arith.mulf %94, %98 : vector<4x512xf32>
    %100 = arith.truncf %99 : vector<4x512xf32> to vector<4x512xbf16>
    %cst_32 = arith.constant dense<0.000000e+00> : vector<4x512xf32>
    %101 = tpu.matmul %74, %100, %cst_32 {dimension_numbers = #tpu.dot_dimension_numbers<[1], [0], [0], [1], [0, 0, 1, 1], [], []>} : vector<4x4xbf16>, vector<4x512xbf16>, vector<4x512xf32> -> vector<4x512xf32>
    %102 = vector.broadcast %5 : vector<4x1xf32> to vector<4x512xf32>
    %103 = arith.addf %101, %102 : vector<4x512xf32>
    %104 = arith.mulf %103, %103 : vector<4x512xf32>
    %105 = arith.mulf %103, %104 : vector<4x512xf32>
    %cst_33 = arith.constant 4.471500e-02 : f32
    %106 = vector.broadcast %cst_33 : f32 to vector<4x512xf32>
    %107 = arith.mulf %106, %105 : vector<4x512xf32>
    %108 = arith.addf %103, %107 : vector<4x512xf32>
    %cst_34 = arith.constant 0.797884583 : f32
    %109 = vector.broadcast %cst_34 : f32 to vector<4x512xf32>
    %110 = arith.mulf %109, %108 : vector<4x512xf32>
    %111 = math.tanh %110 : vector<4x512xf32>
    %cst_35 = arith.constant 1.000000e+00 : f32
    %112 = vector.broadcast %cst_35 : f32 to vector<4x512xf32>
    %113 = arith.addf %112, %111 : vector<4x512xf32>
    %cst_36 = arith.constant 5.000000e-01 : f32
    %114 = vector.broadcast %cst_36 : f32 to vector<4x512xf32>
    %115 = arith.mulf %114, %113 : vector<4x512xf32>
    %116 = arith.mulf %103, %115 : vector<4x512xf32>
    %117 = arith.truncf %116 : vector<4x512xf32> to vector<4x512xbf16>
    %cst_37 = arith.constant dense<0.000000e+00> : vector<4x512xf32>
    %118 = tpu.matmul %76, %117, %cst_37 {dimension_numbers = #tpu.dot_dimension_numbers<[1], [0], [0], [1], [0, 0, 1, 1], [], []>} : vector<4x4xbf16>, vector<4x512xbf16>, vector<4x512xf32> -> vector<4x512xf32>
    %119 = vector.broadcast %6 : vector<4x1xf32> to vector<4x512xf32>
    %120 = arith.addf %118, %119 : vector<4x512xf32>
    %121 = arith.addf %120, %81 : vector<4x512xf32>
    %c0_38 = arith.constant 0 : index
    %c0_39 = arith.constant 0 : index
    %c0_40 = arith.constant 0 : index
    %122 = vector.load %arg5[%c0_38, %c0_39, %c0_40] : memref<1x4x512xf32, #tpu.memory_space<vmem>>, vector<1x4x512xf32>
    %123 = vector.shape_cast %122 : vector<1x4x512xf32> to vector<4x512xf32>
    %124 = vector.shape_cast %121 : vector<4x512xf32> to vector<1x4x512xf32>
    tpu.vector_store %arg5[%c0_38, %c0_39, %c0_40], %124 {strides = array<i32>} : memref<1x4x512xf32, #tpu.memory_space<vmem>>, vector<1x4x512xf32>,
    return
  }
  func.func @transform_0(%arg0: i32) -> (i32, i32, i32) {
    %c0_i32 = arith.constant 0 : i32
    %c0_i32_0 = arith.constant 0 : i32
    %c0_i32_1 = arith.constant 0 : i32
    return %arg0, %c0_i32, %c0_i32_0 : i32, i32, i32
  }
  func.func @transform_1(%arg0: i32) -> (i32, i32) {
    %c0_i32 = arith.constant 0 : i32
    %c0_i32_0 = arith.constant 0 : i32
    %c0_i32_1 = arith.constant 0 : i32
    return %c0_i32, %c0_i32_0 : i32, i32
  }
  func.func @transform_2(%arg0: i32) -> (i32, i32, i32) {
    %c0_i32 = arith.constant 0 : i32
    %c0_i32_0 = arith.constant 0 : i32
    %c0_i32_1 = arith.constant 0 : i32
    %c0_i32_2 = arith.constant 0 : i32
    return %c0_i32, %c0_i32_0, %c0_i32_1 : i32, i32, i32
  }
  func.func @transform_3(%arg0: i32) -> (i32, i32) {
    %c0_i32 = arith.constant 0 : i32
    %c0_i32_0 = arith.constant 0 : i32
    %c0_i32_1 = arith.constant 0 : i32
    return %c0_i32, %c0_i32_0 : i32, i32
  }
  func.func @transform_4(%arg0: i32) -> (i32, i32, i32) {
    %c0_i32 = arith.constant 0 : i32
    %c0_i32_0 = arith.constant 0 : i32
    %c0_i32_1 = arith.constant 0 : i32
    return %arg0, %c0_i32, %c0_i32_0 : i32, i32, i32
  }
}

</mosaic_0001>

<llo_original>
// kernel: self_attention_pallas.1
$region0: #{self_attention_pallas.1}
  #allocation0 [shape = 'u32[]', space=smem, size = 0x4, offset = 0x4, fixed_abs, tag = 'smem constant byte address 0x4 - core index']
  #allocation1 [shape = 'u32[72,128]{1,0:T(1,128)}', space=vmem, size = 0x9000, scoped, tag = 'internal scratch']
  %s0 = inlined_call_operand.vmem [shape: f32[1,4,512], index: 0, kind: input, shape index: {}]
  %s1 = inlined_call_operand.vmem [shape: bf16[12,4], index: 1, kind: input, shape index: {}]
  %s2 = inlined_call_operand.vmem [shape: bf16[3,4,4], index: 2, kind: input, shape index: {}]
  %s3 = inlined_call_operand.vmem [shape: f32[12,4], index: 3, kind: input, shape index: {}]
  %s4 = inlined_call_operand.vmem [shape: f32[1,4,512], index: 4, kind: output, shape index: {}]
  %s5 = sld [smem:[#allocation0]]
  $region26: #{self_attention_pallas.1} parent=0
    _
  %s7 = ssub.s32 1, %s5
  %s8 = scalar_select 0, %s7, %s5
  // Predicated region
  $region2: #{self_attention_pallas.1} parent=0 // pred_check
    _
  $region3: #{self_attention_pallas.1} parent=0 // pred_check_branch
    %10 = sbr.rel (0) target = $region5
  $region4: #{self_attention_pallas.1} parent=0 // pred_region
    _
  $region5: #{self_attention_pallas.1} parent=0 // pred_fallthru
    _
  // Predicated region
  $region6: #{self_attention_pallas.1} parent=0 // pred_check
    _
  $region7: #{self_attention_pallas.1} parent=0 // pred_check_branch
    %12 = sbr.rel (0) target = $region9
  $region8: #{self_attention_pallas.1} parent=0 // pred_region
    _
  $region9: #{self_attention_pallas.1} parent=0 // pred_fallthru
    _
  // Predicated region
  $region10: #{self_attention_pallas.1} parent=0 // pred_check
    _
  $region11: #{self_attention_pallas.1} parent=0 // pred_check_branch
    %14 = sbr.rel (0) target = $region13
  $region12: #{self_attention_pallas.1} parent=0 // pred_region
    _
  $region13: #{self_attention_pallas.1} parent=0 // pred_fallthru
    _
  // Predicated region
  $region14: #{self_attention_pallas.1} parent=0 // pred_check
    _
  $region15: #{self_attention_pallas.1} parent=0 // pred_check_branch
    %16 = sbr.rel (0) target = $region17
  $region16: #{self_attention_pallas.1} parent=0 // pred_region
    _
  $region17: #{self_attention_pallas.1} parent=0 // pred_fallthru
    _
  %v18 = vld [vmem:[%s0] sm:$0xff]
  %v19 = vld [vmem:[%s0 + $0x8] sm:$0xff]
  %v20 = vld [vmem:[%s3] sm:$0xff]
  %v21 = vld [vmem:[%s3 + $0x8] sm:$0xf]
  %24 = vst [vmem:[#allocation1] ss:$2 sm:$0xff] %v18
  %s25 = scalar_lea.vmem [#allocation1], 16
  %26 = vst [vmem:[%s25] ss:$2 sm:$0xff] %v19
  %v27 = vld.sshfl [vmem:[#allocation1] sm:$0xff pattern:$0x75316420]
  %v28 = vld.sshfl [vmem:[#allocation1 + $0x8] sm:$0xff pattern:$0x75316420]
  %v29 = vld.sshfl [vmem:[#allocation1 + $0x10] sm:$0xff pattern:$0x75316420]
  %v30 = vld.sshfl [vmem:[#allocation1 + $0x18] sm:$0xff pattern:$0x75316420]
  %vm35 = vcmask 1043456
  %v36 = vsel %vm35, %v27, 0.0
  %v37 = vrot.slane %v36, 4
  %v38 = vadd.f32 %v36, %v37
  %v39 = vrot.slane %v38, 2
  %v40 = vadd.f32 %v38, %v39
  %v41 = vrot.slane %v40, 1
  %v42 = vadd.f32 %v40, %v41
  %v43 = vsel %vm35, %v28, 0.0
  %v44 = vrot.slane %v43, 4
  %v45 = vadd.f32 %v43, %v44
  %v46 = vrot.slane %v45, 2
  %v47 = vadd.f32 %v45, %v46
  %v48 = vrot.slane %v47, 1
  %v49 = vadd.f32 %v47, %v48
  %v50 = vsel %vm35, %v29, 0.0
  %v51 = vrot.slane %v50, 4
  %v52 = vadd.f32 %v50, %v51
  %v53 = vrot.slane %v52, 2
  %v54 = vadd.f32 %v52, %v53
  %v55 = vrot.slane %v54, 1
  %v56 = vadd.f32 %v54, %v55
  %v57 = vsel %vm35, %v30, 0.0
  %v58 = vrot.slane %v57, 4
  %v59 = vadd.f32 %v57, %v58
  %v60 = vrot.slane %v59, 2
  %v61 = vadd.f32 %v59, %v60
  %v62 = vrot.slane %v61, 1
  %v63 = vadd.f32 %v61, %v62
  %v64 = vrcp.pop 4.0
  %v65 = vmul.f32 4.0, %v64
  %v66 = vsub.f32 1.0, %v65
  %v67 = vmul.f32 %v64, %v66
  %v68 = vadd.f32 %v64, %v67
  %vm69 = vweird.f32 %v64
  %v70 = vsel %vm69, %v64, %v68
  %v71 = vmul.f32 %v42, %v70
  %v72 = vmul.f32 %v49, %v70
  %v73 = vmul.f32 %v56, %v70
  %v74 = vmul.f32 %v63, %v70
  %v79 = vrot.slane %v72, 4
  %v80 = vrot.slane %v74, 4
  %v81 = vsel %vm35, %v71, %v79
  %v82 = vsel %vm35, %v73, %v80
  %v85 = vsub.f32 %v18, %v81
  %v86 = vsub.f32 %v19, %v82
  %v87 = vmul.f32 %v85, %v85
  %v88 = vmul.f32 %v86, %v86
  %91 = vst [vmem:[#allocation1] ss:$2 sm:$0xff] %v87
  %s92 = scalar_lea.vmem [#allocation1], 16
  %93 = vst [vmem:[%s92] ss:$2 sm:$0xff] %v88
  %v94 = vld.sshfl [vmem:[#allocation1] sm:$0xff pattern:$0x75316420]
  %v95 = vld.sshfl [vmem:[#allocation1 + $0x8] sm:$0xff pattern:$0x75316420]
  %v96 = vld.sshfl [vmem:[#allocation1 + $0x10] sm:$0xff pattern:$0x75316420]
  %v97 = vld.sshfl [vmem:[#allocation1 + $0x18] sm:$0xff pattern:$0x75316420]
  %v102 = vsel %vm35, %v94, 0.0
  %v103 = vrot.slane %v102, 4
  %v104 = vadd.f32 %v102, %v103
  %v105 = vrot.slane %v104, 2
  %v106 = vadd.f32 %v104, %v105
  %v107 = vrot.slane %v106, 1
  %v108 = vadd.f32 %v106, %v107
  %v109 = vsel %vm35, %v95, 0.0
  %v110 = vrot.slane %v109, 4
  %v111 = vadd.f32 %v109, %v110
  %v112 = vrot.slane %v111, 2
  %v113 = vadd.f32 %v111, %v112
  %v114 = vrot.slane %v113, 1
  %v115 = vadd.f32 %v113, %v114
  %v116 = vsel %vm35, %v96, 0.0
  %v117 = vrot.slane %v116, 4
  %v118 = vadd.f32 %v116, %v117
  %v119 = vrot.slane %v118, 2
  %v120 = vadd.f32 %v118, %v119
  %v121 = vrot.slane %v120, 1
  %v122 = vadd.f32 %v120, %v121
  %v123 = vsel %vm35, %v97, 0.0
  %v124 = vrot.slane %v123, 4
  %v125 = vadd.f32 %v123, %v124
  %v126 = vrot.slane %v125, 2
  %v127 = vadd.f32 %v125, %v126
  %v128 = vrot.slane %v127, 1
  %v129 = vadd.f32 %v127, %v128
  %v130 = vmul.f32 %v108, %v70
  %v131 = vmul.f32 %v115, %v70
  %v132 = vmul.f32 %v122, %v70
  %v133 = vmul.f32 %v129, %v70
  %v134 = vadd.f32 %v130, 1e-05
  %v135 = vadd.f32 %v131, 1e-05
  %v136 = vadd.f32 %v132, 1e-05
  %v137 = vadd.f32 %v133, 1e-05
  %v138 = vrsqrt.pop %v134
  %v139 = vmul.f32 %v138, %v134
  %v140 = vmul.f32 %v139, %v138
  %v141 = vmul.f32 0.5, %v140
  %v142 = vsub.f32 1.5, %v141
  %v143 = vmul.f32 %v138, %v142
  %vm144 = vweird.f32 %v134
  %vm145 = vweird.f32 %v138
  %vm146 = vmor %vm144, %vm145
  %v147 = vsel %vm146, %v138, %v143
  %v148 = vrsqrt.pop %v135
  %v149 = vmul.f32 %v148, %v135
  %v150 = vmul.f32 %v149, %v148
  %v151 = vmul.f32 0.5, %v150
  %v152 = vsub.f32 1.5, %v151
  %v153 = vmul.f32 %v148, %v152
  %vm154 = vweird.f32 %v135
  %vm155 = vweird.f32 %v148
  %vm156 = vmor %vm154, %vm155
  %v157 = vsel %vm156, %v148, %v153
  %v158 = vrsqrt.pop %v136
  %v159 = vmul.f32 %v158, %v136
  %v160 = vmul.f32 %v159, %v158
  %v161 = vmul.f32 0.5, %v160
  %v162 = vsub.f32 1.5, %v161
  %v163 = vmul.f32 %v158, %v162
  %vm164 = vweird.f32 %v136
  %vm165 = vweird.f32 %v158
  %vm166 = vmor %vm164, %vm165
  %v167 = vsel %vm166, %v158, %v163
  %v168 = vrsqrt.pop %v137
  %v169 = vmul.f32 %v168, %v137
  %v170 = vmul.f32 %v169, %v168
  %v171 = vmul.f32 0.5, %v170
  %v172 = vsub.f32 1.5, %v171
  %v173 = vmul.f32 %v168, %v172
  %vm174 = vweird.f32 %v137
  %vm175 = vweird.f32 %v168
  %vm176 = vmor %vm174, %vm175
  %v177 = vsel %vm176, %v168, %v173
  %v182 = vrot.slane %v157, 4
  %v183 = vrot.slane %v177, 4
  %v184 = vsel %vm35, %v147, %v182
  %v185 = vsel %vm35, %v167, %v183
  %v188 = vmul.f32 %v85, %v184
  %v189 = vmul.f32 %v86, %v185
  %v190 = vld [vmem:[%s1] sm:$0xf]
  %v191 = vld [vmem:[%s1 + $0x4] sm:$0x3]
  %194 = vst [vmem:[#allocation1] ss:$2 sm:$0xff] %v188
  %s195 = scalar_lea.vmem [#allocation1], 16
  %196 = vst [vmem:[%s195] ss:$2 sm:$0xff] %v189
  %v197 = vld.sshfl [vmem:[#allocation1] sm:$0xff pattern:$0x75316420]
  %v198 = vld.sshfl [vmem:[#allocation1 + $0x8] sm:$0xff pattern:$0x75316420]
  %v199 = vld.sshfl [vmem:[#allocation1 + $0x10] sm:$0xff pattern:$0x75316420]
  %v200 = vld.sshfl [vmem:[#allocation1 + $0x18] sm:$0xff pattern:$0x75316420]
  %v205 = vpack.c.bf16 %v197, %v197
  %v206 = vpack.c.bf16 %v198, %v198
  %v207 = vpack.c.bf16 %v199, %v199
  %v208 = vpack.c.bf16 %v200, %v200
  %210 = vset.pattern.permute.xlu0 0
  %211 = vperm.xlu0 %210, %v20
  %v212 = vpop.permute.xlu0 %211
  %215 = vset.pattern.permute.xlu0 0
  %216 = vperm.xlu0 %215, %v21
  %v217 = vpop.permute.xlu0 %216
  %v221 = vunpack.c.l.b16 %v190
  %v222 = vunpack.c.l.b16 %v191
  %v223 = vpack.c.b16 %v222, %v221
  %vm224 = vcmask 31744
  %v226 = vsel %vm224, %v223, 0
  %vm228 = vcmask 1041408
  %v230 = vsel %vm228, %v205, 0
  %v233 = vsel %vm228, %v206, 0
  %v236 = vsel %vm228, %v207, 0
  %v239 = vsel %vm228, %v208, 0
  %241 = vmatpush.bf16.msra.mxu0 0
  %242 = vmatpush.bf16.msra.mxu0 0
  %243 = vmatpush.bf16.msra.mxu0 0
  %244 = vmatpush.bf16.msra.mxu0 0
  %245 = vmatpush.bf16.msra.mxu0 0
  %246 = vmatpush.bf16.msra.mxu0 0
  %247 = vmatpush.bf16.msra.mxu0 0
  %248 = vmatpush.bf16.msra.mxu0 %v230
  %249 = vmatmul.bf16.gmra.mxu0 %v226
  %v250 = vpop.f32.mrf.mxu0
  %v251 = vadd.f32 %v212, %v250
  %v252 = vpop.f32.mrf.mxu0
  %v253 = vadd.f32 %v217, %v252
  %254 = vdwg.mxu0
  %255 = vmatpush.bf16.msra.mxu0 0
  %256 = vmatpush.bf16.msra.mxu0 0
  %257 = vmatpush.bf16.msra.mxu0 0
  %258 = vmatpush.bf16.msra.mxu0 0
  %259 = vmatpush.bf16.msra.mxu0 0
  %260 = vmatpush.bf16.msra.mxu0 0
  %261 = vmatpush.bf16.msra.mxu0 0
  %262 = vmatpush.bf16.msra.mxu0 %v233
  %263 = vmatmul.bf16.gmra.mxu0 %v226
  %v264 = vpop.f32.mrf.mxu0
  %v265 = vadd.f32 %v212, %v264
  %v266 = vpop.f32.mrf.mxu0
  %v267 = vadd.f32 %v217, %v266
  %268 = vdwg.mxu0
  %269 = vmatpush.bf16.msra.mxu0 0
  %270 = vmatpush.bf16.msra.mxu0 0
  %271 = vmatpush.bf16.msra.mxu0 0
  %272 = vmatpush.bf16.msra.mxu0 0
  %273 = vmatpush.bf16.msra.mxu0 0
  %274 = vmatpush.bf16.msra.mxu0 0
  %275 = vmatpush.bf16.msra.mxu0 0
  %276 = vmatpush.bf16.msra.mxu0 %v236
  %277 = vmatmul.bf16.gmra.mxu0 %v226
  %v278 = vpop.f32.mrf.mxu0
  %v279 = vadd.f32 %v212, %v278
  %v280 = vpop.f32.mrf.mxu0
  %v281 = vadd.f32 %v217, %v280
  %282 = vdwg.mxu0
  %283 = vmatpush.bf16.msra.mxu0 0
  %284 = vmatpush.bf16.msra.mxu0 0
  %285 = vmatpush.bf16.msra.mxu0 0
  %286 = vmatpush.bf16.msra.mxu0 0
  %287 = vmatpush.bf16.msra.mxu0 0
  %288 = vmatpush.bf16.msra.mxu0 0
  %289 = vmatpush.bf16.msra.mxu0 0
  %290 = vmatpush.bf16.msra.mxu0 %v239
  %291 = vmatmul.bf16.gmra.mxu0 %v226
  %v292 = vpop.f32.mrf.mxu0
  %v293 = vadd.f32 %v212, %v292
  %v294 = vpop.f32.mrf.mxu0
  %v295 = vadd.f32 %v217, %v294
  %296 = vdwg.mxu0
  %v297 = vpack.c.bf16 %v265, %v251
  %v298 = vpack.c.bf16 %v293, %v279
  %v299 = vpack.c.bf16 %v267, %v253
  %v300 = vpack.c.bf16 %v295, %v281
  %v302 = vunpack.c.l.b16 %v297
  %v303 = vunpack.c.h.b16 %v297
  %v304 = vpack.c.b16 %v302, %v302
  %v305 = vpack.c.b16 %v303, %v303
  %v306 = vrot.slane %v304, 2
  %v307 = vrot.slane %v305, 2
  %310 = vxpose.binary.xlu0.c.b16.start [1/16] %v307, %v306, 128
  %311 = vxpose.binary.xlu0.c.b16.cont [2/16] 0, 0, 128
  %312 = vxpose.binary.xlu0.c.b16.cont [3/16] 0, 0, 128
  %313 = vxpose.binary.xlu0.c.b16.cont [4/16] 0, 0, 128
  %314 = vxpose.binary.xlu0.c.b16.cont [5/16] 0, 0, 128
  %315 = vxpose.binary.xlu0.c.b16.cont [6/16] 0, 0, 128
  %316 = vxpose.binary.xlu0.c.b16.cont [7/16] 0, 0, 128
  %317 = vxpose.binary.xlu0.c.b16.end [8/16] 0, 0, 128
  %v318 = vpop.trf.xlu0
  %v319 = vpop.trf.xlu0
  %v320 = vpop.trf.xlu0
  %v321 = vpop.trf.xlu0
  %v322 = vpop.trf.xlu0
  %v323 = vpop.trf.xlu0
  %v324 = vpop.trf.xlu0
  %v325 = vpop.trf.xlu0
  %v326 = vpop.trf.xlu0
  %v327 = vpop.trf.xlu0
  %v328 = vpop.trf.xlu0
  %v329 = vpop.trf.xlu0
  %v330 = vpop.trf.xlu0
  %v331 = vpop.trf.xlu0
  %v332 = vpop.trf.xlu0
  %v333 = vpop.trf.xlu0
  %v335 = vsel %vm224, %v318, 0
  %v338 = vsel %vm224, %v320, 0
  %v341 = vsel %vm224, %v322, 0
  %v344 = vsel %vm224, %v324, 0
  %v347 = vsel %vm224, %v326, 0
  %v350 = vsel %vm224, %v328, 0
  %v353 = vsel %vm224, %v330, 0
  %v356 = vsel %vm224, %v332, 0
  %v359 = vsel %vm224, %v319, 0
  %v362 = vsel %vm224, %v321, 0
  %v365 = vsel %vm224, %v323, 0
  %v368 = vsel %vm224, %v325, 0
  %v371 = vsel %vm224, %v327, 0
  %v374 = vsel %vm224, %v329, 0
  %v377 = vsel %vm224, %v331, 0
  %v380 = vsel %vm224, %v333, 0
  %v383 = vsel %vm228, %v304, 0
  %v386 = vsel %vm228, %v305, 0
  %388 = vmatpush.bf16.msra.mxu0 0
  %389 = vmatpush.bf16.msra.mxu0 0
  %390 = vmatpush.bf16.msra.mxu0 0
  %391 = vmatpush.bf16.msra.mxu0 0
  %392 = vmatpush.bf16.msra.mxu0 0
  %393 = vmatpush.bf16.msra.mxu0 0
  %394 = vmatpush.bf16.msra.mxu0 0
  %395 = vmatpush.bf16.msra.mxu0 %v383
  %396 = vmatmul.bf16.gmra.mxu0 %v335
  %v397 = vpop.f32.mrf.mxu0
  %v398 = vadd.f32 0.0, %v397
  %v399 = vpop.f32.mrf.mxu0
  %v400 = vadd.f32 0.0, %v399
  %401 = vmatmul.bf16.gmra.mxu0 %v338
  %v402 = vpop.f32.mrf.mxu0
  %v403 = vadd.f32 0.0, %v402
  %v404 = vpop.f32.mrf.mxu0
  %v405 = vadd.f32 0.0, %v404
  %406 = vmatmul.bf16.gmra.mxu0 %v341
  %v407 = vpop.f32.mrf.mxu0
  %v408 = vadd.f32 0.0, %v407
  %v409 = vpop.f32.mrf.mxu0
  %v410 = vadd.f32 0.0, %v409
  %411 = vmatmul.bf16.gmra.mxu0 %v344
  %v412 = vpop.f32.mrf.mxu0
  %v413 = vadd.f32 0.0, %v412
  %v414 = vpop.f32.mrf.mxu0
  %v415 = vadd.f32 0.0, %v414
  %416 = vmatmul.bf16.gmra.mxu0 %v347
  %v417 = vpop.f32.mrf.mxu0
  %v418 = vadd.f32 0.0, %v417
  %v419 = vpop.f32.mrf.mxu0
  %v420 = vadd.f32 0.0, %v419
  %421 = vmatmul.bf16.gmra.mxu0 %v350
  %v422 = vpop.f32.mrf.mxu0
  %v423 = vadd.f32 0.0, %v422
  %v424 = vpop.f32.mrf.mxu0
  %v425 = vadd.f32 0.0, %v424
  %426 = vmatmul.bf16.gmra.mxu0 %v353
  %v427 = vpop.f32.mrf.mxu0
  %v428 = vadd.f32 0.0, %v427
  %v429 = vpop.f32.mrf.mxu0
  %v430 = vadd.f32 0.0, %v429
  %431 = vmatmul.bf16.gmra.mxu0 %v356
  %v432 = vpop.f32.mrf.mxu0
  %v433 = vadd.f32 0.0, %v432
  %v434 = vpop.f32.mrf.mxu0
  %v435 = vadd.f32 0.0, %v434
  %436 = vmatmul.bf16.gmra.mxu0 %v359
  %v437 = vpop.f32.mrf.mxu0
  %v438 = vadd.f32 0.0, %v437
  %v439 = vpop.f32.mrf.mxu0
  %v440 = vadd.f32 0.0, %v439
  %441 = vmatmul.bf16.gmra.mxu0 %v362
  %v442 = vpop.f32.mrf.mxu0
  %v443 = vadd.f32 0.0, %v442
  %v444 = vpop.f32.mrf.mxu0
  %v445 = vadd.f32 0.0, %v444
  %446 = vmatmul.bf16.gmra.mxu0 %v365
  %v447 = vpop.f32.mrf.mxu0
  %v448 = vadd.f32 0.0, %v447
  %v449 = vpop.f32.mrf.mxu0
  %v450 = vadd.f32 0.0, %v449
  %451 = vmatmul.bf16.gmra.mxu0 %v368
  %v452 = vpop.f32.mrf.mxu0
  %v453 = vadd.f32 0.0, %v452
  %v454 = vpop.f32.mrf.mxu0
  %v455 = vadd.f32 0.0, %v454
  %456 = vmatmul.bf16.gmra.mxu0 %v371
  %v457 = vpop.f32.mrf.mxu0
  %v458 = vadd.f32 0.0, %v457
  %v459 = vpop.f32.mrf.mxu0
  %v460 = vadd.f32 0.0, %v459
  %461 = vmatmul.bf16.gmra.mxu0 %v374
  %v462 = vpop.f32.mrf.mxu0
  %v463 = vadd.f32 0.0, %v462
  %v464 = vpop.f32.mrf.mxu0
  %v465 = vadd.f32 0.0, %v464
  %466 = vmatmul.bf16.gmra.mxu0 %v377
  %v467 = vpop.f32.mrf.mxu0
  %v468 = vadd.f32 0.0, %v467
  %v469 = vpop.f32.mrf.mxu0
  %v470 = vadd.f32 0.0, %v469
  %471 = vmatmul.bf16.gmra.mxu0 %v380
  %v472 = vpop.f32.mrf.mxu0
  %v473 = vadd.f32 0.0, %v472
  %v474 = vpop.f32.mrf.mxu0
  %v475 = vadd.f32 0.0, %v474
  %476 = vdwg.mxu0
  %477 = vmatpush.bf16.msra.mxu0 0
  %478 = vmatpush.bf16.msra.mxu0 0
  %479 = vmatpush.bf16.msra.mxu0 0
  %480 = vmatpush.bf16.msra.mxu0 0
  %481 = vmatpush.bf16.msra.mxu0 0
  %482 = vmatpush.bf16.msra.mxu0 0
  %483 = vmatpush.bf16.msra.mxu0 0
  %484 = vmatpush.bf16.msra.mxu0 %v386
  %485 = vmatmul.bf16.gmra.mxu0 %v335
  %v486 = vpop.f32.mrf.mxu0
  %v487 = vadd.f32 0.0, %v486
  %v488 = vpop.f32.mrf.mxu0
  %v489 = vadd.f32 0.0, %v488
  %490 = vmatmul.bf16.gmra.mxu0 %v338
  %v491 = vpop.f32.mrf.mxu0
  %v492 = vadd.f32 0.0, %v491
  %v493 = vpop.f32.mrf.mxu0
  %v494 = vadd.f32 0.0, %v493
  %495 = vmatmul.bf16.gmra.mxu0 %v341
  %v496 = vpop.f32.mrf.mxu0
  %v497 = vadd.f32 0.0, %v496
  %v498 = vpop.f32.mrf.mxu0
  %v499 = vadd.f32 0.0, %v498
  %500 = vmatmul.bf16.gmra.mxu0 %v344
  %v501 = vpop.f32.mrf.mxu0
  %v502 = vadd.f32 0.0, %v501
  %v503 = vpop.f32.mrf.mxu0
  %v504 = vadd.f32 0.0, %v503
  %505 = vmatmul.bf16.gmra.mxu0 %v347
  %v506 = vpop.f32.mrf.mxu0
  %v507 = vadd.f32 0.0, %v506
  %v508 = vpop.f32.mrf.mxu0
  %v509 = vadd.f32 0.0, %v508
  %510 = vmatmul.bf16.gmra.mxu0 %v350
  %v511 = vpop.f32.mrf.mxu0
  %v512 = vadd.f32 0.0, %v511
  %v513 = vpop.f32.mrf.mxu0
  %v514 = vadd.f32 0.0, %v513
  %515 = vmatmul.bf16.gmra.mxu0 %v353
  %v516 = vpop.f32.mrf.mxu0
  %v517 = vadd.f32 0.0, %v516
  %v518 = vpop.f32.mrf.mxu0
  %v519 = vadd.f32 0.0, %v518
  %520 = vmatmul.bf16.gmra.mxu0 %v356
  %v521 = vpop.f32.mrf.mxu0
  %v522 = vadd.f32 0.0, %v521
  %v523 = vpop.f32.mrf.mxu0
  %v524 = vadd.f32 0.0, %v523
  %525 = vmatmul.bf16.gmra.mxu0 %v359
  %v526 = vpop.f32.mrf.mxu0
  %v527 = vadd.f32 0.0, %v526
  %v528 = vpop.f32.mrf.mxu0
  %v529 = vadd.f32 0.0, %v528
  %530 = vmatmul.bf16.gmra.mxu0 %v362
  %v531 = vpop.f32.mrf.mxu0
  %v532 = vadd.f32 0.0, %v531
  %v533 = vpop.f32.mrf.mxu0
  %v534 = vadd.f32 0.0, %v533
  %535 = vmatmul.bf16.gmra.mxu0 %v365
  %v536 = vpop.f32.mrf.mxu0
  %v537 = vadd.f32 0.0, %v536
  %v538 = vpop.f32.mrf.mxu0
  %v539 = vadd.f32 0.0, %v538
  %540 = vmatmul.bf16.gmra.mxu0 %v368
  %v541 = vpop.f32.mrf.mxu0
  %v542 = vadd.f32 0.0, %v541
  %v543 = vpop.f32.mrf.mxu0
  %v544 = vadd.f32 0.0, %v543
  %545 = vmatmul.bf16.gmra.mxu0 %v371
  %v546 = vpop.f32.mrf.mxu0
  %v547 = vadd.f32 0.0, %v546
  %v548 = vpop.f32.mrf.mxu0
  %v549 = vadd.f32 0.0, %v548
  %550 = vmatmul.bf16.gmra.mxu0 %v374
  %v551 = vpop.f32.mrf.mxu0
  %v552 = vadd.f32 0.0, %v551
  %v553 = vpop.f32.mrf.mxu0
  %v554 = vadd.f32 0.0, %v553
  %555 = vmatmul.bf16.gmra.mxu0 %v377
  %v556 = vpop.f32.mrf.mxu0
  %v557 = vadd.f32 0.0, %v556
  %v558 = vpop.f32.mrf.mxu0
  %v559 = vadd.f32 0.0, %v558
  %560 = vmatmul.bf16.gmra.mxu0 %v380
  %v561 = vpop.f32.mrf.mxu0
  %v562 = vadd.f32 0.0, %v561
  %v563 = vpop.f32.mrf.mxu0
  %v564 = vadd.f32 0.0, %v563
  %565 = vdwg.mxu0
  %v566 = vmax.f32 %v398, %v403
  %v567 = vmax.f32 %v400, %v405
  %v568 = vmax.f32 %v566, %v408
  %v569 = vmax.f32 %v567, %v410
  %v570 = vmax.f32 %v568, %v413
  %v571 = vmax.f32 %v569, %v415
  %v572 = vmax.f32 %v570, %v418
  %v573 = vmax.f32 %v571, %v420
  %v574 = vmax.f32 %v572, %v423
  %v575 = vmax.f32 %v573, %v425
  %v576 = vmax.f32 %v574, %v428
  %v577 = vmax.f32 %v575, %v430
  %v578 = vmax.f32 %v576, %v433
  %v579 = vmax.f32 %v577, %v435
  %v580 = vmax.f32 %v578, %v438
  %v581 = vmax.f32 %v579, %v440
  %v582 = vmax.f32 %v580, %v443
  %v583 = vmax.f32 %v581, %v445
  %v584 = vmax.f32 %v582, %v448
  %v585 = vmax.f32 %v583, %v450
  %v586 = vmax.f32 %v584, %v453
  %v587 = vmax.f32 %v585, %v455
  %v588 = vmax.f32 %v586, %v458
  %v589 = vmax.f32 %v587, %v460
  %v590 = vmax.f32 %v588, %v463
  %v591 = vmax.f32 %v589, %v465
  %v592 = vmax.f32 %v590, %v468
  %v593 = vmax.f32 %v591, %v470
  %v594 = vmax.f32 %v592, %v473
  %v595 = vmax.f32 %v593, %v475
  %v596 = vmax.f32 %v594, %v595
  %v597 = vrot.slane %v596, 4
  %v598 = vmax.f32 %v596, %v597
  %v599 = vrot.slane %v598, 2
  %v600 = vmax.f32 %v598, %v599
  %v601 = vrot.slane %v600, 1
  %v602 = vmax.f32 %v600, %v601
  %v603 = vmax.f32 %v487, %v492
  %v604 = vmax.f32 %v489, %v494
  %v605 = vmax.f32 %v603, %v497
  %v606 = vmax.f32 %v604, %v499
  %v607 = vmax.f32 %v605, %v502
  %v608 = vmax.f32 %v606, %v504
  %v609 = vmax.f32 %v607, %v507
  %v610 = vmax.f32 %v608, %v509
  %v611 = vmax.f32 %v609, %v512
  %v612 = vmax.f32 %v610, %v514
  %v613 = vmax.f32 %v611, %v517
  %v614 = vmax.f32 %v612, %v519
  %v615 = vmax.f32 %v613, %v522
  %v616 = vmax.f32 %v614, %v524
  %v617 = vmax.f32 %v615, %v527
  %v618 = vmax.f32 %v616, %v529
  %v619 = vmax.f32 %v617, %v532
  %v620 = vmax.f32 %v618, %v534
  %v621 = vmax.f32 %v619, %v537
  %v622 = vmax.f32 %v620, %v539
  %v623 = vmax.f32 %v621, %v542
  %v624 = vmax.f32 %v622, %v544
  %v625 = vmax.f32 %v623, %v547
  %v626 = vmax.f32 %v624, %v549
  %v627 = vmax.f32 %v625, %v552
  %v628 = vmax.f32 %v626, %v554
  %v629 = vmax.f32 %v627, %v557
  %v630 = vmax.f32 %v628, %v559
  %v631 = vmax.f32 %v629, %v562
  %v632 = vmax.f32 %v630, %v564
  %v633 = vmax.f32 %v631, %v632
  %v634 = vrot.slane %v633, 4
  %v635 = vmax.f32 %v633, %v634
  %v636 = vrot.slane %v635, 2
  %v637 = vmax.f32 %v635, %v636
  %v638 = vrot.slane %v637, 1
  %v639 = vmax.f32 %v637, %v638
  %v640 = vsub.f32 %v398, %v602
  %v641 = vsub.f32 %v487, %v639
  %v642 = vsub.f32 %v400, %v602
  %v643 = vsub.f32 %v489, %v639
  %v644 = vsub.f32 %v403, %v602
  %v645 = vsub.f32 %v492, %v639
  %v646 = vsub.f32 %v405, %v602
  %v647 = vsub.f32 %v494, %v639
  %v648 = vsub.f32 %v408, %v602
  %v649 = vsub.f32 %v497, %v639
  %v650 = vsub.f32 %v410, %v602
  %v651 = vsub.f32 %v499, %v639
  %v652 = vsub.f32 %v413, %v602
  %v653 = vsub.f32 %v502, %v639
  %v654 = vsub.f32 %v415, %v602
  %v655 = vsub.f32 %v504, %v639
  %v656 = vsub.f32 %v418, %v602
  %v657 = vsub.f32 %v507, %v639
  %v658 = vsub.f32 %v420, %v602
  %v659 = vsub.f32 %v509, %v639
  %v660 = vsub.f32 %v423, %v602
  %v661 = vsub.f32 %v512, %v639
  %v662 = vsub.f32 %v425, %v602
  %v663 = vsub.f32 %v514, %v639
  %v664 = vsub.f32 %v428, %v602
  %v665 = vsub.f32 %v517, %v639
  %v666 = vsub.f32 %v430, %v602
  %v667 = vsub.f32 %v519, %v639
  %v668 = vsub.f32 %v433, %v602
  %v669 = vsub.f32 %v522, %v639
  %v670 = vsub.f32 %v435, %v602
  %v671 = vsub.f32 %v524, %v639
  %v672 = vsub.f32 %v438, %v602
  %v673 = vsub.f32 %v527, %v639
  %v674 = vsub.f32 %v440, %v602
  %v675 = vsub.f32 %v529, %v639
  %v676 = vsub.f32 %v443, %v602
  %v677 = vsub.f32 %v532, %v639
  %v678 = vsub.f32 %v445, %v602
  %v679 = vsub.f32 %v534, %v639
  %v680 = vsub.f32 %v448, %v602
  %v681 = vsub.f32 %v537, %v639
  %v682 = vsub.f32 %v450, %v602
  %v683 = vsub.f32 %v539, %v639
  %v684 = vsub.f32 %v453, %v602
  %v685 = vsub.f32 %v542, %v639
  %v686 = vsub.f32 %v455, %v602
  %v687 = vsub.f32 %v544, %v639
  %v688 = vsub.f32 %v458, %v602
  %v689 = vsub.f32 %v547, %v639
  %v690 = vsub.f32 %v460, %v602
  %v691 = vsub.f32 %v549, %v639
  %v692 = vsub.f32 %v463, %v602
  %v693 = vsub.f32 %v552, %v639
  %v694 = vsub.f32 %v465, %v602
  %v695 = vsub.f32 %v554, %v639
  %v696 = vsub.f32 %v468, %v602
  %v697 = vsub.f32 %v557, %v639
  %v698 = vsub.f32 %v470, %v602
  %v699 = vsub.f32 %v559, %v639
  %v700 = vsub.f32 %v473, %v602
  %v701 = vsub.f32 %v562, %v639
  %v702 = vsub.f32 %v475, %v602
  %v703 = vsub.f32 %v564, %v639
  %v704 = vmul.f32 %v640, 1.442695
  %v705 = vpow.pop %v704
  %v706 = vmul.f32 %v641, 1.442695
  %v707 = vpow.pop %v706
  %v708 = vmul.f32 %v642, 1.442695
  %v709 = vpow.pop %v708
  %v710 = vmul.f32 %v643, 1.442695
  %v711 = vpow.pop %v710
  %v712 = vmul.f32 %v644, 1.442695
  %v713 = vpow.pop %v712
  %v714 = vmul.f32 %v645, 1.442695
  %v715 = vpow.pop %v714
  %v716 = vmul.f32 %v646, 1.442695
  %v717 = vpow.pop %v716
  %v718 = vmul.f32 %v647, 1.442695
  %v719 = vpow.pop %v718
  %v720 = vmul.f32 %v648, 1.442695
  %v721 = vpow.pop %v720
  %v722 = vmul.f32 %v649, 1.442695
  %v723 = vpow.pop %v722
  %v724 = vmul.f32 %v650, 1.442695
  %v725 = vpow.pop %v724
  %v726 = vmul.f32 %v651, 1.442695
  %v727 = vpow.pop %v726
  %v728 = vmul.f32 %v652, 1.442695
  %v729 = vpow.pop %v728
  %v730 = vmul.f32 %v653, 1.442695
  %v731 = vpow.pop %v730
  %v732 = vmul.f32 %v654, 1.442695
  %v733 = vpow.pop %v732
  %v734 = vmul.f32 %v655, 1.442695
  %v735 = vpow.pop %v734
  %v736 = vmul.f32 %v656, 1.442695
  %v737 = vpow.pop %v736
  %v738 = vmul.f32 %v657, 1.442695
  %v739 = vpow.pop %v738
  %v740 = vmul.f32 %v658, 1.442695
  %v741 = vpow.pop %v740
  %v742 = vmul.f32 %v659, 1.442695
  %v743 = vpow.pop %v742
  %v744 = vmul.f32 %v660, 1.442695
  %v745 = vpow.pop %v744
  %v746 = vmul.f32 %v661, 1.442695
  %v747 = vpow.pop %v746
  %v748 = vmul.f32 %v662, 1.442695
  %v749 = vpow.pop %v748
  %v750 = vmul.f32 %v663, 1.442695
  %v751 = vpow.pop %v750
  %v752 = vmul.f32 %v664, 1.442695
  %v753 = vpow.pop %v752
  %v754 = vmul.f32 %v665, 1.442695
  %v755 = vpow.pop %v754
  %v756 = vmul.f32 %v666, 1.442695
  %v757 = vpow.pop %v756
  %v758 = vmul.f32 %v667, 1.442695
  %v759 = vpow.pop %v758
  %v760 = vmul.f32 %v668, 1.442695
  %v761 = vpow.pop %v760
  %v762 = vmul.f32 %v669, 1.442695
  %v763 = vpow.pop %v762
  %v764 = vmul.f32 %v670, 1.442695
  %v765 = vpow.pop %v764
  %v766 = vmul.f32 %v671, 1.442695
  %v767 = vpow.pop %v766
  %v768 = vmul.f32 %v672, 1.442695
  %v769 = vpow.pop %v768
  %v770 = vmul.f32 %v673, 1.442695
  %v771 = vpow.pop %v770
  %v772 = vmul.f32 %v674, 1.442695
  %v773 = vpow.pop %v772
  %v774 = vmul.f32 %v675, 1.442695
  %v775 = vpow.pop %v774
  %v776 = vmul.f32 %v676, 1.442695
  %v777 = vpow.pop %v776
  %v778 = vmul.f32 %v677, 1.442695
  %v779 = vpow.pop %v778
  %v780 = vmul.f32 %v678, 1.442695
  %v781 = vpow.pop %v780
  %v782 = vmul.f32 %v679, 1.442695
  %v783 = vpow.pop %v782
  %v784 = vmul.f32 %v680, 1.442695
  %v785 = vpow.pop %v784
  %v786 = vmul.f32 %v681, 1.442695
  %v787 = vpow.pop %v786
  %v788 = vmul.f32 %v682, 1.442695
  %v789 = vpow.pop %v788
  %v790 = vmul.f32 %v683, 1.442695
  %v791 = vpow.pop %v790
  %v792 = vmul.f32 %v684, 1.442695
  %v793 = vpow.pop %v792
  %v794 = vmul.f32 %v685, 1.442695
  %v795 = vpow.pop %v794
  %v796 = vmul.f32 %v686, 1.442695
  %v797 = vpow.pop %v796
  %v798 = vmul.f32 %v687, 1.442695
  %v799 = vpow.pop %v798
  %v800 = vmul.f32 %v688, 1.442695
  %v801 = vpow.pop %v800
  %v802 = vmul.f32 %v689, 1.442695
  %v803 = vpow.pop %v802
  %v804 = vmul.f32 %v690, 1.442695
  %v805 = vpow.pop %v804
  %v806 = vmul.f32 %v691, 1.442695
  %v807 = vpow.pop %v806
  %v808 = vmul.f32 %v692, 1.442695
  %v809 = vpow.pop %v808
  %v810 = vmul.f32 %v693, 1.442695
  %v811 = vpow.pop %v810
  %v812 = vmul.f32 %v694, 1.442695
  %v813 = vpow.pop %v812
  %v814 = vmul.f32 %v695, 1.442695
  %v815 = vpow.pop %v814
  %v816 = vmul.f32 %v696, 1.442695
  %v817 = vpow.pop %v816
  %v818 = vmul.f32 %v697, 1.442695
  %v819 = vpow.pop %v818
  %v820 = vmul.f32 %v698, 1.442695
  %v821 = vpow.pop %v820
  %v822 = vmul.f32 %v699, 1.442695
  %v823 = vpow.pop %v822
  %v824 = vmul.f32 %v700, 1.442695
  %v825 = vpow.pop %v824
  %v826 = vmul.f32 %v701, 1.442695
  %v827 = vpow.pop %v826
  %v828 = vmul.f32 %v702, 1.442695
  %v829 = vpow.pop %v828
  %v830 = vmul.f32 %v703, 1.442695
  %v831 = vpow.pop %v830
  %v832 = vpack.c.bf16 %v709, %v705
  %v833 = vpack.c.bf16 %v711, %v707
  %v834 = vpack.c.bf16 %v717, %v713
  %v835 = vpack.c.bf16 %v719, %v715
  %v836 = vpack.c.bf16 %v725, %v721
  %v837 = vpack.c.bf16 %v727, %v723
  %v838 = vpack.c.bf16 %v733, %v729
  %v839 = vpack.c.bf16 %v735, %v731
  %v840 = vpack.c.bf16 %v741, %v737
  %v841 = vpack.c.bf16 %v743, %v739
  %v842 = vpack.c.bf16 %v749, %v745
  %v843 = vpack.c.bf16 %v751, %v747
  %v844 = vpack.c.bf16 %v757, %v753
  %v845 = vpack.c.bf16 %v759, %v755
  %v846 = vpack.c.bf16 %v765, %v761
  %v847 = vpack.c.bf16 %v767, %v763
  %v848 = vpack.c.bf16 %v773, %v769
  %v849 = vpack.c.bf16 %v775, %v771
  %v850 = vpack.c.bf16 %v781, %v777
  %v851 = vpack.c.bf16 %v783, %v779
  %v852 = vpack.c.bf16 %v789, %v785
  %v853 = vpack.c.bf16 %v791, %v787
  %v854 = vpack.c.bf16 %v797, %v793
  %v855 = vpack.c.bf16 %v799, %v795
  %v856 = vpack.c.bf16 %v805, %v801
  %v857 = vpack.c.bf16 %v807, %v803
  %v858 = vpack.c.bf16 %v813, %v809
  %v859 = vpack.c.bf16 %v815, %v811
  %v860 = vpack.c.bf16 %v821, %v817
  %v861 = vpack.c.bf16 %v823, %v819
  %v862 = vpack.c.bf16 %v829, %v825
  %v863 = vpack.c.bf16 %v831, %v827
  %v864 = vunpack.c.l.bf16 %v832
  %v865 = vunpack.c.l.bf16 %v833
  %v866 = vunpack.c.h.bf16 %v832
  %v867 = vunpack.c.h.bf16 %v833
  %v868 = vunpack.c.l.bf16 %v834
  %v869 = vunpack.c.l.bf16 %v835
  %v870 = vunpack.c.h.bf16 %v834
  %v871 = vunpack.c.h.bf16 %v835
  %v872 = vunpack.c.l.bf16 %v836
  %v873 = vunpack.c.l.bf16 %v837
  %v874 = vunpack.c.h.bf16 %v836
  %v875 = vunpack.c.h.bf16 %v837
  %v876 = vunpack.c.l.bf16 %v838
  %v877 = vunpack.c.l.bf16 %v839
  %v878 = vunpack.c.h.bf16 %v838
  %v879 = vunpack.c.h.bf16 %v839
  %v880 = vunpack.c.l.bf16 %v840
  %v881 = vunpack.c.l.bf16 %v841
  %v882 = vunpack.c.h.bf16 %v840
  %v883 = vunpack.c.h.bf16 %v841
  %v884 = vunpack.c.l.bf16 %v842
  %v885 = vunpack.c.l.bf16 %v843
  %v886 = vunpack.c.h.bf16 %v842
  %v887 = vunpack.c.h.bf16 %v843
  %v888 = vunpack.c.l.bf16 %v844
  %v889 = vunpack.c.l.bf16 %v845
  %v890 = vunpack.c.h.bf16 %v844
  %v891 = vunpack.c.h.bf16 %v845
  %v892 = vunpack.c.l.bf16 %v846
  %v893 = vunpack.c.l.bf16 %v847
  %v894 = vunpack.c.h.bf16 %v846
  %v895 = vunpack.c.h.bf16 %v847
  %v896 = vunpack.c.l.bf16 %v848
  %v897 = vunpack.c.l.bf16 %v849
  %v898 = vunpack.c.h.bf16 %v848
  %v899 = vunpack.c.h.bf16 %v849
  %v900 = vunpack.c.l.bf16 %v850
  %v901 = vunpack.c.l.bf16 %v851
  %v902 = vunpack.c.h.bf16 %v850
  %v903 = vunpack.c.h.bf16 %v851
  %v904 = vunpack.c.l.bf16 %v852
  %v905 = vunpack.c.l.bf16 %v853
  %v906 = vunpack.c.h.bf16 %v852
  %v907 = vunpack.c.h.bf16 %v853
  %v908 = vunpack.c.l.bf16 %v854
  %v909 = vunpack.c.l.bf16 %v855
  %v910 = vunpack.c.h.bf16 %v854
  %v911 = vunpack.c.h.bf16 %v855
  %v912 = vunpack.c.l.bf16 %v856
  %v913 = vunpack.c.l.bf16 %v857
  %v914 = vunpack.c.h.bf16 %v856
  %v915 = vunpack.c.h.bf16 %v857
  %v916 = vunpack.c.l.bf16 %v858
  %v917 = vunpack.c.l.bf16 %v859
  %v918 = vunpack.c.h.bf16 %v858
  %v919 = vunpack.c.h.bf16 %v859
  %v920 = vunpack.c.l.bf16 %v860
  %v921 = vunpack.c.l.bf16 %v861
  %v922 = vunpack.c.h.bf16 %v860
  %v923 = vunpack.c.h.bf16 %v861
  %v924 = vunpack.c.l.bf16 %v862
  %v925 = vunpack.c.l.bf16 %v863
  %v926 = vunpack.c.h.bf16 %v862
  %v927 = vunpack.c.h.bf16 %v863
  %v928 = vadd.f32 %v864, %v866
  %v929 = vadd.f32 %v928, %v868
  %v930 = vadd.f32 %v929, %v870
  %v931 = vadd.f32 %v930, %v872
  %v932 = vadd.f32 %v931, %v874
  %v933 = vadd.f32 %v932, %v876
  %v934 = vadd.f32 %v933, %v878
  %v935 = vadd.f32 %v934, %v880
  %v936 = vadd.f32 %v935, %v882
  %v937 = vadd.f32 %v936, %v884
  %v938 = vadd.f32 %v937, %v886
  %v939 = vadd.f32 %v938, %v888
  %v940 = vadd.f32 %v939, %v890
  %v941 = vadd.f32 %v940, %v892
  %v942 = vadd.f32 %v941, %v894
  %v943 = vadd.f32 %v942, %v896
  %v944 = vadd.f32 %v943, %v898
  %v945 = vadd.f32 %v944, %v900
  %v946 = vadd.f32 %v945, %v902
  %v947 = vadd.f32 %v946, %v904
  %v948 = vadd.f32 %v947, %v906
  %v949 = vadd.f32 %v948, %v908
  %v950 = vadd.f32 %v949, %v910
  %v951 = vadd.f32 %v950, %v912
  %v952 = vadd.f32 %v951, %v914
  %v953 = vadd.f32 %v952, %v916
  %v954 = vadd.f32 %v953, %v918
  %v955 = vadd.f32 %v954, %v920
  %v956 = vadd.f32 %v955, %v922
  %v957 = vadd.f32 %v956, %v924
  %v958 = vadd.f32 %v957, %v926
  %v959 = vrot.slane %v958, 4
  %v960 = vadd.f32 %v958, %v959
  %v961 = vrot.slane %v960, 2
  %v962 = vadd.f32 %v960, %v961
  %v963 = vrot.slane %v962, 1
  %v964 = vadd.f32 %v962, %v963
  %v965 = vadd.f32 %v865, %v867
  %v966 = vadd.f32 %v965, %v869
  %v967 = vadd.f32 %v966, %v871
  %v968 = vadd.f32 %v967, %v873
  %v969 = vadd.f32 %v968, %v875
  %v970 = vadd.f32 %v969, %v877
  %v971 = vadd.f32 %v970, %v879
  %v972 = vadd.f32 %v971, %v881
  %v973 = vadd.f32 %v972, %v883
  %v974 = vadd.f32 %v973, %v885
  %v975 = vadd.f32 %v974, %v887
  %v976 = vadd.f32 %v975, %v889
  %v977 = vadd.f32 %v976, %v891
  %v978 = vadd.f32 %v977, %v893
  %v979 = vadd.f32 %v978, %v895
  %v980 = vadd.f32 %v979, %v897
  %v981 = vadd.f32 %v980, %v899
  %v982 = vadd.f32 %v981, %v901
  %v983 = vadd.f32 %v982, %v903
  %v984 = vadd.f32 %v983, %v905
  %v985 = vadd.f32 %v984, %v907
  %v986 = vadd.f32 %v985, %v909
  %v987 = vadd.f32 %v986, %v911
  %v988 = vadd.f32 %v987, %v913
  %v989 = vadd.f32 %v988, %v915
  %v990 = vadd.f32 %v989, %v917
  %v991 = vadd.f32 %v990, %v919
  %v992 = vadd.f32 %v991, %v921
  %v993 = vadd.f32 %v992, %v923
  %v994 = vadd.f32 %v993, %v925
  %v995 = vadd.f32 %v994, %v927
  %v996 = vrot.slane %v995, 4
  %v997 = vadd.f32 %v995, %v996
  %v998 = vrot.slane %v997, 2
  %v999 = vadd.f32 %v997, %v998
  %v1000 = vrot.slane %v999, 1
  %v1001 = vadd.f32 %v999, %v1000
  %v1002 = vrcp.pop %v964
  %v1003 = vrcp.pop %v1001
  %v1005 = vunpack.c.l.b16 %v299
  %v1006 = vunpack.c.h.b16 %v299
  %v1007 = vpack.c.b16 %v1005, %v1005
  %v1008 = vpack.c.b16 %v1006, %v1006
  %1011 = vmatpush.bf16.msra.mxu0 %v846
  %1012 = vmatpush.bf16.msra.mxu0 %v844
  %1013 = vmatpush.bf16.msra.mxu0 %v842
  %1014 = vmatpush.bf16.msra.mxu0 %v840
  %1015 = vmatpush.bf16.msra.mxu0 %v838
  %1016 = vmatpush.bf16.msra.mxu0 %v836
  %1017 = vmatpush.bf16.msra.mxu0 %v834
  %1018 = vmatpush.bf16.msra.mxu0 %v832
  %1019 = vmatmul.bf16.gmra.mxu0 %v1007
  %v1020 = vpop.f32.mrf.mxu0
  %v1021 = vadd.f32 0.0, %v1020
  %v1022 = vpop.f32.mrf.mxu0
  %1023 = vdwg.mxu0
  %1024 = vmatpush.bf16.msra.mxu0 %v862
  %1025 = vmatpush.bf16.msra.mxu0 %v860
  %1026 = vmatpush.bf16.msra.mxu0 %v858
  %1027 = vmatpush.bf16.msra.mxu0 %v856
  %1028 = vmatpush.bf16.msra.mxu0 %v854
  %1029 = vmatpush.bf16.msra.mxu0 %v852
  %1030 = vmatpush.bf16.msra.mxu0 %v850
  %1031 = vmatpush.bf16.msra.mxu0 %v848
  %1032 = vmatmul.bf16.gmra.mxu0 %v1008
  %v1033 = vpop.f32.mrf.mxu0
  %v1034 = vadd.f32 %v1021, %v1033
  %v1035 = vpop.f32.mrf.mxu0
  %1036 = vdwg.mxu0
  %1037 = vmatpush.bf16.msra.mxu0 %v847
  %1038 = vmatpush.bf16.msra.mxu0 %v845
  %1039 = vmatpush.bf16.msra.mxu0 %v843
  %1040 = vmatpush.bf16.msra.mxu0 %v841
  %1041 = vmatpush.bf16.msra.mxu0 %v839
  %1042 = vmatpush.bf16.msra.mxu0 %v837
  %1043 = vmatpush.bf16.msra.mxu0 %v835
  %1044 = vmatpush.bf16.msra.mxu0 %v833
  %1045 = vmatmul.bf16.gmra.mxu0 %v1007
  %v1046 = vpop.f32.mrf.mxu0
  %v1047 = vadd.f32 0.0, %v1046
  %v1048 = vpop.f32.mrf.mxu0
  %1049 = vdwg.mxu0
  %1050 = vmatpush.bf16.msra.mxu0 %v863
  %1051 = vmatpush.bf16.msra.mxu0 %v861
  %1052 = vmatpush.bf16.msra.mxu0 %v859
  %1053 = vmatpush.bf16.msra.mxu0 %v857
  %1054 = vmatpush.bf16.msra.mxu0 %v855
  %1055 = vmatpush.bf16.msra.mxu0 %v853
  %1056 = vmatpush.bf16.msra.mxu0 %v851
  %1057 = vmatpush.bf16.msra.mxu0 %v849
  %1058 = vmatmul.bf16.gmra.mxu0 %v1008
  %v1059 = vpop.f32.mrf.mxu0
  %v1060 = vadd.f32 %v1047, %v1059
  %v1061 = vpop.f32.mrf.mxu0
  %1062 = vdwg.mxu0
  %v1063 = vmul.f32 %v1034, %v1002
  %v1064 = vmul.f32 %v1060, %v1003
  %v1066 = vunpack.c.l.b16 %v298
  %v1067 = vunpack.c.h.b16 %v298
  %v1068 = vpack.c.b16 %v1066, %v1066
  %v1069 = vpack.c.b16 %v1067, %v1067
  %v1070 = vrot.slane %v1068, 2
  %v1071 = vrot.slane %v1069, 2
  %1074 = vxpose.binary.xlu0.c.b16.start [1/16] %v1071, %v1070, 128
  %1075 = vxpose.binary.xlu0.c.b16.cont [2/16] 0, 0, 128
  %1076 = vxpose.binary.xlu0.c.b16.cont [3/16] 0, 0, 128
  %1077 = vxpose.binary.xlu0.c.b16.cont [4/16] 0, 0, 128
  %1078 = vxpose.binary.xlu0.c.b16.cont [5/16] 0, 0, 128
  %1079 = vxpose.binary.xlu0.c.b16.cont [6/16] 0, 0, 128
  %1080 = vxpose.binary.xlu0.c.b16.cont [7/16] 0, 0, 128
  %1081 = vxpose.binary.xlu0.c.b16.end [8/16] 0, 0, 128
  %v1082 = vpop.trf.xlu0
  %v1083 = vpop.trf.xlu0
  %v1084 = vpop.trf.xlu0
  %v1085 = vpop.trf.xlu0
  %v1086 = vpop.trf.xlu0
  %v1087 = vpop.trf.xlu0
  %v1088 = vpop.trf.xlu0
  %v1089 = vpop.trf.xlu0
  %v1090 = vpop.trf.xlu0
  %v1091 = vpop.trf.xlu0
  %v1092 = vpop.trf.xlu0
  %v1093 = vpop.trf.xlu0
  %v1094 = vpop.trf.xlu0
  %v1095 = vpop.trf.xlu0
  %v1096 = vpop.trf.xlu0
  %v1097 = vpop.trf.xlu0
  %v1099 = vsel %vm224, %v1082, 0
  %v1102 = vsel %vm224, %v1084, 0
  %v1105 = vsel %vm224, %v1086, 0
  %v1108 = vsel %vm224, %v1088, 0
  %v1111 = vsel %vm224, %v1090, 0
  %v1114 = vsel %vm224, %v1092, 0
  %v1117 = vsel %vm224, %v1094, 0
  %v1120 = vsel %vm224, %v1096, 0
  %v1123 = vsel %vm224, %v1083, 0
  %v1126 = vsel %vm224, %v1085, 0
  %v1129 = vsel %vm224, %v1087, 0
  %v1132 = vsel %vm224, %v1089, 0
  %v1135 = vsel %vm224, %v1091, 0
  %v1138 = vsel %vm224, %v1093, 0
  %v1141 = vsel %vm224, %v1095, 0
  %v1144 = vsel %vm224, %v1097, 0
  %v1147 = vsel %vm228, %v1068, 0
  %v1150 = vsel %vm228, %v1069, 0
  %1152 = vmatpush.bf16.msra.mxu0 0
  %1153 = vmatpush.bf16.msra.mxu0 0
  %1154 = vmatpush.bf16.msra.mxu0 0
  %1155 = vmatpush.bf16.msra.mxu0 0
  %1156 = vmatpush.bf16.msra.mxu0 0
  %1157 = vmatpush.bf16.msra.mxu0 0
  %1158 = vmatpush.bf16.msra.mxu0 0
  %1159 = vmatpush.bf16.msra.mxu0 %v1147
  %1160 = vmatmul.bf16.gmra.mxu0 %v1099
  %v1161 = vpop.f32.mrf.mxu0
  %v1162 = vadd.f32 0.0, %v1161
  %v1163 = vpop.f32.mrf.mxu0
  %v1164 = vadd.f32 0.0, %v1163
  %1165 = vmatmul.bf16.gmra.mxu0 %v1102
  %v1166 = vpop.f32.mrf.mxu0
  %v1167 = vadd.f32 0.0, %v1166
  %v1168 = vpop.f32.mrf.mxu0
  %v1169 = vadd.f32 0.0, %v1168
  %1170 = vmatmul.bf16.gmra.mxu0 %v1105
  %v1171 = vpop.f32.mrf.mxu0
  %v1172 = vadd.f32 0.0, %v1171
  %v1173 = vpop.f32.mrf.mxu0
  %v1174 = vadd.f32 0.0, %v1173
  %1175 = vmatmul.bf16.gmra.mxu0 %v1108
  %v1176 = vpop.f32.mrf.mxu0
  %v1177 = vadd.f32 0.0, %v1176
  %v1178 = vpop.f32.mrf.mxu0
  %v1179 = vadd.f32 0.0, %v1178
  %1180 = vmatmul.bf16.gmra.mxu0 %v1111
  %v1181 = vpop.f32.mrf.mxu0
  %v1182 = vadd.f32 0.0, %v1181
  %v1183 = vpop.f32.mrf.mxu0
  %v1184 = vadd.f32 0.0, %v1183
  %1185 = vmatmul.bf16.gmra.mxu0 %v1114
  %v1186 = vpop.f32.mrf.mxu0
  %v1187 = vadd.f32 0.0, %v1186
  %v1188 = vpop.f32.mrf.mxu0
  %v1189 = vadd.f32 0.0, %v1188
  %1190 = vmatmul.bf16.gmra.mxu0 %v1117
  %v1191 = vpop.f32.mrf.mxu0
  %v1192 = vadd.f32 0.0, %v1191
  %v1193 = vpop.f32.mrf.mxu0
  %v1194 = vadd.f32 0.0, %v1193
  %1195 = vmatmul.bf16.gmra.mxu0 %v1120
  %v1196 = vpop.f32.mrf.mxu0
  %v1197 = vadd.f32 0.0, %v1196
  %v1198 = vpop.f32.mrf.mxu0
  %v1199 = vadd.f32 0.0, %v1198
  %1200 = vmatmul.bf16.gmra.mxu0 %v1123
  %v1201 = vpop.f32.mrf.mxu0
  %v1202 = vadd.f32 0.0, %v1201
  %v1203 = vpop.f32.mrf.mxu0
  %v1204 = vadd.f32 0.0, %v1203
  %1205 = vmatmul.bf16.gmra.mxu0 %v1126
  %v1206 = vpop.f32.mrf.mxu0
  %v1207 = vadd.f32 0.0, %v1206
  %v1208 = vpop.f32.mrf.mxu0
  %v1209 = vadd.f32 0.0, %v1208
  %1210 = vmatmul.bf16.gmra.mxu0 %v1129
  %v1211 = vpop.f32.mrf.mxu0
  %v1212 = vadd.f32 0.0, %v1211
  %v1213 = vpop.f32.mrf.mxu0
  %v1214 = vadd.f32 0.0, %v1213
  %1215 = vmatmul.bf16.gmra.mxu0 %v1132
  %v1216 = vpop.f32.mrf.mxu0
  %v1217 = vadd.f32 0.0, %v1216
  %v1218 = vpop.f32.mrf.mxu0
  %v1219 = vadd.f32 0.0, %v1218
  %1220 = vmatmul.bf16.gmra.mxu0 %v1135
  %v1221 = vpop.f32.mrf.mxu0
  %v1222 = vadd.f32 0.0, %v1221
  %v1223 = vpop.f32.mrf.mxu0
  %v1224 = vadd.f32 0.0, %v1223
  %1225 = vmatmul.bf16.gmra.mxu0 %v1138
  %v1226 = vpop.f32.mrf.mxu0
  %v1227 = vadd.f32 0.0, %v1226
  %v1228 = vpop.f32.mrf.mxu0
  %v1229 = vadd.f32 0.0, %v1228
  %1230 = vmatmul.bf16.gmra.mxu0 %v1141
  %v1231 = vpop.f32.mrf.mxu0
  %v1232 = vadd.f32 0.0, %v1231
  %v1233 = vpop.f32.mrf.mxu0
  %v1234 = vadd.f32 0.0, %v1233
  %1235 = vmatmul.bf16.gmra.mxu0 %v1144
  %v1236 = vpop.f32.mrf.mxu0
  %v1237 = vadd.f32 0.0, %v1236
  %v1238 = vpop.f32.mrf.mxu0
  %v1239 = vadd.f32 0.0, %v1238
  %1240 = vdwg.mxu0
  %1241 = vmatpush.bf16.msra.mxu0 0
  %1242 = vmatpush.bf16.msra.mxu0 0
  %1243 = vmatpush.bf16.msra.mxu0 0
  %1244 = vmatpush.bf16.msra.mxu0 0
  %1245 = vmatpush.bf16.msra.mxu0 0
  %1246 = vmatpush.bf16.msra.mxu0 0
  %1247 = vmatpush.bf16.msra.mxu0 0
  %1248 = vmatpush.bf16.msra.mxu0 %v1150
  %1249 = vmatmul.bf16.gmra.mxu0 %v1099
  %v1250 = vpop.f32.mrf.mxu0
  %v1251 = vadd.f32 0.0, %v1250
  %v1252 = vpop.f32.mrf.mxu0
  %v1253 = vadd.f32 0.0, %v1252
  %1254 = vmatmul.bf16.gmra.mxu0 %v1102
  %v1255 = vpop.f32.mrf.mxu0
  %v1256 = vadd.f32 0.0, %v1255
  %v1257 = vpop.f32.mrf.mxu0
  %v1258 = vadd.f32 0.0, %v1257
  %1259 = vmatmul.bf16.gmra.mxu0 %v1105
  %v1260 = vpop.f32.mrf.mxu0
  %v1261 = vadd.f32 0.0, %v1260
  %v1262 = vpop.f32.mrf.mxu0
  %v1263 = vadd.f32 0.0, %v1262
  %1264 = vmatmul.bf16.gmra.mxu0 %v1108
  %v1265 = vpop.f32.mrf.mxu0
  %v1266 = vadd.f32 0.0, %v1265
  %v1267 = vpop.f32.mrf.mxu0
  %v1268 = vadd.f32 0.0, %v1267
  %1269 = vmatmul.bf16.gmra.mxu0 %v1111
  %v1270 = vpop.f32.mrf.mxu0
  %v1271 = vadd.f32 0.0, %v1270
  %v1272 = vpop.f32.mrf.mxu0
  %v1273 = vadd.f32 0.0, %v1272
  %1274 = vmatmul.bf16.gmra.mxu0 %v1114
  %v1275 = vpop.f32.mrf.mxu0
  %v1276 = vadd.f32 0.0, %v1275
  %v1277 = vpop.f32.mrf.mxu0
  %v1278 = vadd.f32 0.0, %v1277
  %1279 = vmatmul.bf16.gmra.mxu0 %v1117
  %v1280 = vpop.f32.mrf.mxu0
  %v1281 = vadd.f32 0.0, %v1280
  %v1282 = vpop.f32.mrf.mxu0
  %v1283 = vadd.f32 0.0, %v1282
  %1284 = vmatmul.bf16.gmra.mxu0 %v1120
  %v1285 = vpop.f32.mrf.mxu0
  %v1286 = vadd.f32 0.0, %v1285
  %v1287 = vpop.f32.mrf.mxu0
  %v1288 = vadd.f32 0.0, %v1287
  %1289 = vmatmul.bf16.gmra.mxu0 %v1123
  %v1290 = vpop.f32.mrf.mxu0
  %v1291 = vadd.f32 0.0, %v1290
  %v1292 = vpop.f32.mrf.mxu0
  %v1293 = vadd.f32 0.0, %v1292
  %1294 = vmatmul.bf16.gmra.mxu0 %v1126
  %v1295 = vpop.f32.mrf.mxu0
  %v1296 = vadd.f32 0.0, %v1295
  %v1297 = vpop.f32.mrf.mxu0
  %v1298 = vadd.f32 0.0, %v1297
  %1299 = vmatmul.bf16.gmra.mxu0 %v1129
  %v1300 = vpop.f32.mrf.mxu0
  %v1301 = vadd.f32 0.0, %v1300
  %v1302 = vpop.f32.mrf.mxu0
  %v1303 = vadd.f32 0.0, %v1302
  %1304 = vmatmul.bf16.gmra.mxu0 %v1132
  %v1305 = vpop.f32.mrf.mxu0
  %v1306 = vadd.f32 0.0, %v1305
  %v1307 = vpop.f32.mrf.mxu0
  %v1308 = vadd.f32 0.0, %v1307
  %1309 = vmatmul.bf16.gmra.mxu0 %v1135
  %v1310 = vpop.f32.mrf.mxu0
  %v1311 = vadd.f32 0.0, %v1310
  %v1312 = vpop.f32.mrf.mxu0
  %v1313 = vadd.f32 0.0, %v1312
  %1314 = vmatmul.bf16.gmra.mxu0 %v1138
  %v1315 = vpop.f32.mrf.mxu0
  %v1316 = vadd.f32 0.0, %v1315
  %v1317 = vpop.f32.mrf.mxu0
  %v1318 = vadd.f32 0.0, %v1317
  %1319 = vmatmul.bf16.gmra.mxu0 %v1141
  %v1320 = vpop.f32.mrf.mxu0
  %v1321 = vadd.f32 0.0, %v1320
  %v1322 = vpop.f32.mrf.mxu0
  %v1323 = vadd.f32 0.0, %v1322
  %1324 = vmatmul.bf16.gmra.mxu0 %v1144
  %v1325 = vpop.f32.mrf.mxu0
  %v1326 = vadd.f32 0.0, %v1325
  %v1327 = vpop.f32.mrf.mxu0
  %v1328 = vadd.f32 0.0, %v1327
  %1329 = vdwg.mxu0
  %v1330 = vmax.f32 %v1162, %v1167
  %v1331 = vmax.f32 %v1164, %v1169
  %v1332 = vmax.f32 %v1330, %v1172
  %v1333 = vmax.f32 %v1331, %v1174
  %v1334 = vmax.f32 %v1332, %v1177
  %v1335 = vmax.f32 %v1333, %v1179
  %v1336 = vmax.f32 %v1334, %v1182
  %v1337 = vmax.f32 %v1335, %v1184
  %v1338 = vmax.f32 %v1336, %v1187
  %v1339 = vmax.f32 %v1337, %v1189
  %v1340 = vmax.f32 %v1338, %v1192
  %v1341 = vmax.f32 %v1339, %v1194
  %v1342 = vmax.f32 %v1340, %v1197
  %v1343 = vmax.f32 %v1341, %v1199
  %v1344 = vmax.f32 %v1342, %v1202
  %v1345 = vmax.f32 %v1343, %v1204
  %v1346 = vmax.f32 %v1344, %v1207
  %v1347 = vmax.f32 %v1345, %v1209
  %v1348 = vmax.f32 %v1346, %v1212
  %v1349 = vmax.f32 %v1347, %v1214
  %v1350 = vmax.f32 %v1348, %v1217
  %v1351 = vmax.f32 %v1349, %v1219
  %v1352 = vmax.f32 %v1350, %v1222
  %v1353 = vmax.f32 %v1351, %v1224
  %v1354 = vmax.f32 %v1352, %v1227
  %v1355 = vmax.f32 %v1353, %v1229
  %v1356 = vmax.f32 %v1354, %v1232
  %v1357 = vmax.f32 %v1355, %v1234
  %v1358 = vmax.f32 %v1356, %v1237
  %v1359 = vmax.f32 %v1357, %v1239
  %v1360 = vmax.f32 %v1358, %v1359
  %v1361 = vrot.slane %v1360, 4
  %v1362 = vmax.f32 %v1360, %v1361
  %v1363 = vrot.slane %v1362, 2
  %v1364 = vmax.f32 %v1362, %v1363
  %v1365 = vrot.slane %v1364, 1
  %v1366 = vmax.f32 %v1364, %v1365
  %v1367 = vmax.f32 %v1251, %v1256
  %v1368 = vmax.f32 %v1253, %v1258
  %v1369 = vmax.f32 %v1367, %v1261
  %v1370 = vmax.f32 %v1368, %v1263
  %v1371 = vmax.f32 %v1369, %v1266
  %v1372 = vmax.f32 %v1370, %v1268
  %v1373 = vmax.f32 %v1371, %v1271
  %v1374 = vmax.f32 %v1372, %v1273
  %v1375 = vmax.f32 %v1373, %v1276
  %v1376 = vmax.f32 %v1374, %v1278
  %v1377 = vmax.f32 %v1375, %v1281
  %v1378 = vmax.f32 %v1376, %v1283
  %v1379 = vmax.f32 %v1377, %v1286
  %v1380 = vmax.f32 %v1378, %v1288
  %v1381 = vmax.f32 %v1379, %v1291
  %v1382 = vmax.f32 %v1380, %v1293
  %v1383 = vmax.f32 %v1381, %v1296
  %v1384 = vmax.f32 %v1382, %v1298
  %v1385 = vmax.f32 %v1383, %v1301
  %v1386 = vmax.f32 %v1384, %v1303
  %v1387 = vmax.f32 %v1385, %v1306
  %v1388 = vmax.f32 %v1386, %v1308
  %v1389 = vmax.f32 %v1387, %v1311
  %v1390 = vmax.f32 %v1388, %v1313
  %v1391 = vmax.f32 %v1389, %v1316
  %v1392 = vmax.f32 %v1390, %v1318
  %v1393 = vmax.f32 %v1391, %v1321
  %v1394 = vmax.f32 %v1392, %v1323
  %v1395 = vmax.f32 %v1393, %v1326
  %v1396 = vmax.f32 %v1394, %v1328
  %v1397 = vmax.f32 %v1395, %v1396
  %v1398 = vrot.slane %v1397, 4
  %v1399 = vmax.f32 %v1397, %v1398
  %v1400 = vrot.slane %v1399, 2
  %v1401 = vmax.f32 %v1399, %v1400
  %v1402 = vrot.slane %v1401, 1
  %v1403 = vmax.f32 %v1401, %v1402
  %v1404 = vsub.f32 %v1162, %v1366
  %v1405 = vsub.f32 %v1251, %v1403
  %v1406 = vsub.f32 %v1164, %v1366
  %v1407 = vsub.f32 %v1253, %v1403
  %v1408 = vsub.f32 %v1167, %v1366
  %v1409 = vsub.f32 %v1256, %v1403
  %v1410 = vsub.f32 %v1169, %v1366
  %v1411 = vsub.f32 %v1258, %v1403
  %v1412 = vsub.f32 %v1172, %v1366
  %v1413 = vsub.f32 %v1261, %v1403
  %v1414 = vsub.f32 %v1174, %v1366
  %v1415 = vsub.f32 %v1263, %v1403
  %v1416 = vsub.f32 %v1177, %v1366
  %v1417 = vsub.f32 %v1266, %v1403
  %v1418 = vsub.f32 %v1179, %v1366
  %v1419 = vsub.f32 %v1268, %v1403
  %v1420 = vsub.f32 %v1182, %v1366
  %v1421 = vsub.f32 %v1271, %v1403
  %v1422 = vsub.f32 %v1184, %v1366
  %v1423 = vsub.f32 %v1273, %v1403
  %v1424 = vsub.f32 %v1187, %v1366
  %v1425 = vsub.f32 %v1276, %v1403
  %v1426 = vsub.f32 %v1189, %v1366
  %v1427 = vsub.f32 %v1278, %v1403
  %v1428 = vsub.f32 %v1192, %v1366
  %v1429 = vsub.f32 %v1281, %v1403
  %v1430 = vsub.f32 %v1194, %v1366
  %v1431 = vsub.f32 %v1283, %v1403
  %v1432 = vsub.f32 %v1197, %v1366
  %v1433 = vsub.f32 %v1286, %v1403
  %v1434 = vsub.f32 %v1199, %v1366
  %v1435 = vsub.f32 %v1288, %v1403
  %v1436 = vsub.f32 %v1202, %v1366
  %v1437 = vsub.f32 %v1291, %v1403
  %v1438 = vsub.f32 %v1204, %v1366
  %v1439 = vsub.f32 %v1293, %v1403
  %v1440 = vsub.f32 %v1207, %v1366
  %v1441 = vsub.f32 %v1296, %v1403
  %v1442 = vsub.f32 %v1209, %v1366
  %v1443 = vsub.f32 %v1298, %v1403
  %v1444 = vsub.f32 %v1212, %v1366
  %v1445 = vsub.f32 %v1301, %v1403
  %v1446 = vsub.f32 %v1214, %v1366
  %v1447 = vsub.f32 %v1303, %v1403
  %v1448 = vsub.f32 %v1217, %v1366
  %v1449 = vsub.f32 %v1306, %v1403
  %v1450 = vsub.f32 %v1219, %v1366
  %v1451 = vsub.f32 %v1308, %v1403
  %v1452 = vsub.f32 %v1222, %v1366
  %v1453 = vsub.f32 %v1311, %v1403
  %v1454 = vsub.f32 %v1224, %v1366
  %v1455 = vsub.f32 %v1313, %v1403
  %v1456 = vsub.f32 %v1227, %v1366
  %v1457 = vsub.f32 %v1316, %v1403
  %v1458 = vsub.f32 %v1229, %v1366
  %v1459 = vsub.f32 %v1318, %v1403
  %v1460 = vsub.f32 %v1232, %v1366
  %v1461 = vsub.f32 %v1321, %v1403
  %v1462 = vsub.f32 %v1234, %v1366
  %v1463 = vsub.f32 %v1323, %v1403
  %v1464 = vsub.f32 %v1237, %v1366
  %v1465 = vsub.f32 %v1326, %v1403
  %v1466 = vsub.f32 %v1239, %v1366
  %v1467 = vsub.f32 %v1328, %v1403
  %v1468 = vmul.f32 %v1404, 1.442695
  %v1469 = vpow.pop %v1468
  %v1470 = vmul.f32 %v1405, 1.442695
  %v1471 = vpow.pop %v1470
  %v1472 = vmul.f32 %v1406, 1.442695
  %v1473 = vpow.pop %v1472
  %v1474 = vmul.f32 %v1407, 1.442695
  %v1475 = vpow.pop %v1474
  %v1476 = vmul.f32 %v1408, 1.442695
  %v1477 = vpow.pop %v1476
  %v1478 = vmul.f32 %v1409, 1.442695
  %v1479 = vpow.pop %v1478
  %v1480 = vmul.f32 %v1410, 1.442695
  %v1481 = vpow.pop %v1480
  %v1482 = vmul.f32 %v1411, 1.442695
  %v1483 = vpow.pop %v1482
  %v1484 = vmul.f32 %v1412, 1.442695
  %v1485 = vpow.pop %v1484
  %v1486 = vmul.f32 %v1413, 1.442695
  %v1487 = vpow.pop %v1486
  %v1488 = vmul.f32 %v1414, 1.442695
  %v1489 = vpow.pop %v1488
  %v1490 = vmul.f32 %v1415, 1.442695
  %v1491 = vpow.pop %v1490
  %v1492 = vmul.f32 %v1416, 1.442695
  %v1493 = vpow.pop %v1492
  %v1494 = vmul.f32 %v1417, 1.442695
  %v1495 = vpow.pop %v1494
  %v1496 = vmul.f32 %v1418, 1.442695
  %v1497 = vpow.pop %v1496
  %v1498 = vmul.f32 %v1419, 1.442695
  %v1499 = vpow.pop %v1498
  %v1500 = vmul.f32 %v1420, 1.442695
  %v1501 = vpow.pop %v1500
  %v1502 = vmul.f32 %v1421, 1.442695
  %v1503 = vpow.pop %v1502
  %v1504 = vmul.f32 %v1422, 1.442695
  %v1505 = vpow.pop %v1504
  %v1506 = vmul.f32 %v1423, 1.442695
  %v1507 = vpow.pop %v1506
  %v1508 = vmul.f32 %v1424, 1.442695
  %v1509 = vpow.pop %v1508
  %v1510 = vmul.f32 %v1425, 1.442695
  %v1511 = vpow.pop %v1510
  %v1512 = vmul.f32 %v1426, 1.442695
  %v1513 = vpow.pop %v1512
  %v1514 = vmul.f32 %v1427, 1.442695
  %v1515 = vpow.pop %v1514
  %v1516 = vmul.f32 %v1428, 1.442695
  %v1517 = vpow.pop %v1516
  %v1518 = vmul.f32 %v1429, 1.442695
  %v1519 = vpow.pop %v1518
  %v1520 = vmul.f32 %v1430, 1.442695
  %v1521 = vpow.pop %v1520
  %v1522 = vmul.f32 %v1431, 1.442695
  %v1523 = vpow.pop %v1522
  %v1524 = vmul.f32 %v1432, 1.442695
  %v1525 = vpow.pop %v1524
  %v1526 = vmul.f32 %v1433, 1.442695
  %v1527 = vpow.pop %v1526
  %v1528 = vmul.f32 %v1434, 1.442695
  %v1529 = vpow.pop %v1528
  %v1530 = vmul.f32 %v1435, 1.442695
  %v1531 = vpow.pop %v1530
  %v1532 = vmul.f32 %v1436, 1.442695
  %v1533 = vpow.pop %v1532
  %v1534 = vmul.f32 %v1437, 1.442695
  %v1535 = vpow.pop %v1534
  %v1536 = vmul.f32 %v1438, 1.442695
  %v1537 = vpow.pop %v1536
  %v1538 = vmul.f32 %v1439, 1.442695
  %v1539 = vpow.pop %v1538
  %v1540 = vmul.f32 %v1440, 1.442695
  %v1541 = vpow.pop %v1540
  %v1542 = vmul.f32 %v1441, 1.442695
  %v1543 = vpow.pop %v1542
  %v1544 = vmul.f32 %v1442, 1.442695
  %v1545 = vpow.pop %v1544
  %v1546 = vmul.f32 %v1443, 1.442695
  %v1547 = vpow.pop %v1546
  %v1548 = vmul.f32 %v1444, 1.442695
  %v1549 = vpow.pop %v1548
  %v1550 = vmul.f32 %v1445, 1.442695
  %v1551 = vpow.pop %v1550
  %v1552 = vmul.f32 %v1446, 1.442695
  %v1553 = vpow.pop %v1552
  %v1554 = vmul.f32 %v1447, 1.442695
  %v1555 = vpow.pop %v1554
  %v1556 = vmul.f32 %v1448, 1.442695
  %v1557 = vpow.pop %v1556
  %v1558 = vmul.f32 %v1449, 1.442695
  %v1559 = vpow.pop %v1558
  %v1560 = vmul.f32 %v1450, 1.442695
  %v1561 = vpow.pop %v1560
  %v1562 = vmul.f32 %v1451, 1.442695
  %v1563 = vpow.pop %v1562
  %v1564 = vmul.f32 %v1452, 1.442695
  %v1565 = vpow.pop %v1564
  %v1566 = vmul.f32 %v1453, 1.442695
  %v1567 = vpow.pop %v1566
  %v1568 = vmul.f32 %v1454, 1.442695
  %v1569 = vpow.pop %v1568
  %v1570 = vmul.f32 %v1455, 1.442695
  %v1571 = vpow.pop %v1570
  %v1572 = vmul.f32 %v1456, 1.442695
  %v1573 = vpow.pop %v1572
  %v1574 = vmul.f32 %v1457, 1.442695
  %v1575 = vpow.pop %v1574
  %v1576 = vmul.f32 %v1458, 1.442695
  %v1577 = vpow.pop %v1576
  %v1578 = vmul.f32 %v1459, 1.442695
  %v1579 = vpow.pop %v1578
  %v1580 = vmul.f32 %v1460, 1.442695
  %v1581 = vpow.pop %v1580
  %v1582 = vmul.f32 %v1461, 1.442695
  %v1583 = vpow.pop %v1582
  %v1584 = vmul.f32 %v1462, 1.442695
  %v1585 = vpow.pop %v1584
  %v1586 = vmul.f32 %v1463, 1.442695
  %v1587 = vpow.pop %v1586
  %v1588 = vmul.f32 %v1464, 1.442695
  %v1589 = vpow.pop %v1588
  %v1590 = vmul.f32 %v1465, 1.442695
  %v1591 = vpow.pop %v1590
  %v1592 = vmul.f32 %v1466, 1.442695
  %v1593 = vpow.pop %v1592
  %v1594 = vmul.f32 %v1467, 1.442695
  %v1595 = vpow.pop %v1594
  %v1596 = vpack.c.bf16 %v1473, %v1469
  %v1597 = vpack.c.bf16 %v1475, %v1471
  %v1598 = vpack.c.bf16 %v1481, %v1477
  %v1599 = vpack.c.bf16 %v1483, %v1479
  %v1600 = vpack.c.bf16 %v1489, %v1485
  %v1601 = vpack.c.bf16 %v1491, %v1487
  %v1602 = vpack.c.bf16 %v1497, %v1493
  %v1603 = vpack.c.bf16 %v1499, %v1495
  %v1604 = vpack.c.bf16 %v1505, %v1501
  %v1605 = vpack.c.bf16 %v1507, %v1503
  %v1606 = vpack.c.bf16 %v1513, %v1509
  %v1607 = vpack.c.bf16 %v1515, %v1511
  %v1608 = vpack.c.bf16 %v1521, %v1517
  %v1609 = vpack.c.bf16 %v1523, %v1519
  %v1610 = vpack.c.bf16 %v1529, %v1525
  %v1611 = vpack.c.bf16 %v1531, %v1527
  %v1612 = vpack.c.bf16 %v1537, %v1533
  %v1613 = vpack.c.bf16 %v1539, %v1535
  %v1614 = vpack.c.bf16 %v1545, %v1541
  %v1615 = vpack.c.bf16 %v1547, %v1543
  %v1616 = vpack.c.bf16 %v1553, %v1549
  %v1617 = vpack.c.bf16 %v1555, %v1551
  %v1618 = vpack.c.bf16 %v1561, %v1557
  %v1619 = vpack.c.bf16 %v1563, %v1559
  %v1620 = vpack.c.bf16 %v1569, %v1565
  %v1621 = vpack.c.bf16 %v1571, %v1567
  %v1622 = vpack.c.bf16 %v1577, %v1573
  %v1623 = vpack.c.bf16 %v1579, %v1575
  %v1624 = vpack.c.bf16 %v1585, %v1581
  %v1625 = vpack.c.bf16 %v1587, %v1583
  %v1626 = vpack.c.bf16 %v1593, %v1589
  %v1627 = vpack.c.bf16 %v1595, %v1591
  %v1628 = vunpack.c.l.bf16 %v1596
  %v1629 = vunpack.c.l.bf16 %v1597
  %v1630 = vunpack.c.h.bf16 %v1596
  %v1631 = vunpack.c.h.bf16 %v1597
  %v1632 = vunpack.c.l.bf16 %v1598
  %v1633 = vunpack.c.l.bf16 %v1599
  %v1634 = vunpack.c.h.bf16 %v1598
  %v1635 = vunpack.c.h.bf16 %v1599
  %v1636 = vunpack.c.l.bf16 %v1600
  %v1637 = vunpack.c.l.bf16 %v1601
  %v1638 = vunpack.c.h.bf16 %v1600
  %v1639 = vunpack.c.h.bf16 %v1601
  %v1640 = vunpack.c.l.bf16 %v1602
  %v1641 = vunpack.c.l.bf16 %v1603
  %v1642 = vunpack.c.h.bf16 %v1602
  %v1643 = vunpack.c.h.bf16 %v1603
  %v1644 = vunpack.c.l.bf16 %v1604
  %v1645 = vunpack.c.l.bf16 %v1605
  %v1646 = vunpack.c.h.bf16 %v1604
  %v1647 = vunpack.c.h.bf16 %v1605
  %v1648 = vunpack.c.l.bf16 %v1606
  %v1649 = vunpack.c.l.bf16 %v1607
  %v1650 = vunpack.c.h.bf16 %v1606
  %v1651 = vunpack.c.h.bf16 %v1607
  %v1652 = vunpack.c.l.bf16 %v1608
  %v1653 = vunpack.c.l.bf16 %v1609
  %v1654 = vunpack.c.h.bf16 %v1608
  %v1655 = vunpack.c.h.bf16 %v1609
  %v1656 = vunpack.c.l.bf16 %v1610
  %v1657 = vunpack.c.l.bf16 %v1611
  %v1658 = vunpack.c.h.bf16 %v1610
  %v1659 = vunpack.c.h.bf16 %v1611
  %v1660 = vunpack.c.l.bf16 %v1612
  %v1661 = vunpack.c.l.bf16 %v1613
  %v1662 = vunpack.c.h.bf16 %v1612
  %v1663 = vunpack.c.h.bf16 %v1613
  %v1664 = vunpack.c.l.bf16 %v1614
  %v1665 = vunpack.c.l.bf16 %v1615
  %v1666 = vunpack.c.h.bf16 %v1614
  %v1667 = vunpack.c.h.bf16 %v1615
  %v1668 = vunpack.c.l.bf16 %v1616
  %v1669 = vunpack.c.l.bf16 %v1617
  %v1670 = vunpack.c.h.bf16 %v1616
  %v1671 = vunpack.c.h.bf16 %v1617
  %v1672 = vunpack.c.l.bf16 %v1618
  %v1673 = vunpack.c.l.bf16 %v1619
  %v1674 = vunpack.c.h.bf16 %v1618
  %v1675 = vunpack.c.h.bf16 %v1619
  %v1676 = vunpack.c.l.bf16 %v1620
  %v1677 = vunpack.c.l.bf16 %v1621
  %v1678 = vunpack.c.h.bf16 %v1620
  %v1679 = vunpack.c.h.bf16 %v1621
  %v1680 = vunpack.c.l.bf16 %v1622
  %v1681 = vunpack.c.l.bf16 %v1623
  %v1682 = vunpack.c.h.bf16 %v1622
  %v1683 = vunpack.c.h.bf16 %v1623
  %v1684 = vunpack.c.l.bf16 %v1624
  %v1685 = vunpack.c.l.bf16 %v1625
  %v1686 = vunpack.c.h.bf16 %v1624
  %v1687 = vunpack.c.h.bf16 %v1625
  %v1688 = vunpack.c.l.bf16 %v1626
  %v1689 = vunpack.c.l.bf16 %v1627
  %v1690 = vunpack.c.h.bf16 %v1626
  %v1691 = vunpack.c.h.bf16 %v1627
  %v1692 = vadd.f32 %v1628, %v1630
  %v1693 = vadd.f32 %v1692, %v1632
  %v1694 = vadd.f32 %v1693, %v1634
  %v1695 = vadd.f32 %v1694, %v1636
  %v1696 = vadd.f32 %v1695, %v1638
  %v1697 = vadd.f32 %v1696, %v1640
  %v1698 = vadd.f32 %v1697, %v1642
  %v1699 = vadd.f32 %v1698, %v1644
  %v1700 = vadd.f32 %v1699, %v1646
  %v1701 = vadd.f32 %v1700, %v1648
  %v1702 = vadd.f32 %v1701, %v1650
  %v1703 = vadd.f32 %v1702, %v1652
  %v1704 = vadd.f32 %v1703, %v1654
  %v1705 = vadd.f32 %v1704, %v1656
  %v1706 = vadd.f32 %v1705, %v1658
  %v1707 = vadd.f32 %v1706, %v1660
  %v1708 = vadd.f32 %v1707, %v1662
  %v1709 = vadd.f32 %v1708, %v1664
  %v1710 = vadd.f32 %v1709, %v1666
  %v1711 = vadd.f32 %v1710, %v1668
  %v1712 = vadd.f32 %v1711, %v1670
  %v1713 = vadd.f32 %v1712, %v1672
  %v1714 = vadd.f32 %v1713, %v1674
  %v1715 = vadd.f32 %v1714, %v1676
  %v1716 = vadd.f32 %v1715, %v1678
  %v1717 = vadd.f32 %v1716, %v1680
  %v1718 = vadd.f32 %v1717, %v1682
  %v1719 = vadd.f32 %v1718, %v1684
  %v1720 = vadd.f32 %v1719, %v1686
  %v1721 = vadd.f32 %v1720, %v1688
  %v1722 = vadd.f32 %v1721, %v1690
  %v1723 = vrot.slane %v1722, 4
  %v1724 = vadd.f32 %v1722, %v1723
  %v1725 = vrot.slane %v1724, 2
  %v1726 = vadd.f32 %v1724, %v1725
  %v1727 = vrot.slane %v1726, 1
  %v1728 = vadd.f32 %v1726, %v1727
  %v1729 = vadd.f32 %v1629, %v1631
  %v1730 = vadd.f32 %v1729, %v1633
  %v1731 = vadd.f32 %v1730, %v1635
  %v1732 = vadd.f32 %v1731, %v1637
  %v1733 = vadd.f32 %v1732, %v1639
  %v1734 = vadd.f32 %v1733, %v1641
  %v1735 = vadd.f32 %v1734, %v1643
  %v1736 = vadd.f32 %v1735, %v1645
  %v1737 = vadd.f32 %v1736, %v1647
  %v1738 = vadd.f32 %v1737, %v1649
  %v1739 = vadd.f32 %v1738, %v1651
  %v1740 = vadd.f32 %v1739, %v1653
  %v1741 = vadd.f32 %v1740, %v1655
  %v1742 = vadd.f32 %v1741, %v1657
  %v1743 = vadd.f32 %v1742, %v1659
  %v1744 = vadd.f32 %v1743, %v1661
  %v1745 = vadd.f32 %v1744, %v1663
  %v1746 = vadd.f32 %v1745, %v1665
  %v1747 = vadd.f32 %v1746, %v1667
  %v1748 = vadd.f32 %v1747, %v1669
  %v1749 = vadd.f32 %v1748, %v1671
  %v1750 = vadd.f32 %v1749, %v1673
  %v1751 = vadd.f32 %v1750, %v1675
  %v1752 = vadd.f32 %v1751, %v1677
  %v1753 = vadd.f32 %v1752, %v1679
  %v1754 = vadd.f32 %v1753, %v1681
  %v1755 = vadd.f32 %v1754, %v1683
  %v1756 = vadd.f32 %v1755, %v1685
  %v1757 = vadd.f32 %v1756, %v1687
  %v1758 = vadd.f32 %v1757, %v1689
  %v1759 = vadd.f32 %v1758, %v1691
  %v1760 = vrot.slane %v1759, 4
  %v1761 = vadd.f32 %v1759, %v1760
  %v1762 = vrot.slane %v1761, 2
  %v1763 = vadd.f32 %v1761, %v1762
  %v1764 = vrot.slane %v1763, 1
  %v1765 = vadd.f32 %v1763, %v1764
  %v1766 = vrcp.pop %v1728
  %v1767 = vrcp.pop %v1765
  %v1769 = vunpack.c.l.b16 %v300
  %v1770 = vunpack.c.h.b16 %v300
  %v1771 = vpack.c.b16 %v1769, %v1769
  %v1772 = vpack.c.b16 %v1770, %v1770
  %1775 = vmatpush.bf16.msra.mxu0 %v1610
  %1776 = vmatpush.bf16.msra.mxu0 %v1608
  %1777 = vmatpush.bf16.msra.mxu0 %v1606
  %1778 = vmatpush.bf16.msra.mxu0 %v1604
  %1779 = vmatpush.bf16.msra.mxu0 %v1602
  %1780 = vmatpush.bf16.msra.mxu0 %v1600
  %1781 = vmatpush.bf16.msra.mxu0 %v1598
  %1782 = vmatpush.bf16.msra.mxu0 %v1596
  %1783 = vmatmul.bf16.gmra.mxu0 %v1771
  %v1784 = vpop.f32.mrf.mxu0
  %v1785 = vadd.f32 0.0, %v1784
  %v1786 = vpop.f32.mrf.mxu0
  %1787 = vdwg.mxu0
  %1788 = vmatpush.bf16.msra.mxu0 %v1626
  %1789 = vmatpush.bf16.msra.mxu0 %v1624
  %1790 = vmatpush.bf16.msra.mxu0 %v1622
  %1791 = vmatpush.bf16.msra.mxu0 %v1620
  %1792 = vmatpush.bf16.msra.mxu0 %v1618
  %1793 = vmatpush.bf16.msra.mxu0 %v1616
  %1794 = vmatpush.bf16.msra.mxu0 %v1614
  %1795 = vmatpush.bf16.msra.mxu0 %v1612
  %1796 = vmatmul.bf16.gmra.mxu0 %v1772
  %v1797 = vpop.f32.mrf.mxu0
  %v1798 = vadd.f32 %v1785, %v1797
  %v1799 = vpop.f32.mrf.mxu0
  %1800 = vdwg.mxu0
  %1801 = vmatpush.bf16.msra.mxu0 %v1611
  %1802 = vmatpush.bf16.msra.mxu0 %v1609
  %1803 = vmatpush.bf16.msra.mxu0 %v1607
  %1804 = vmatpush.bf16.msra.mxu0 %v1605
  %1805 = vmatpush.bf16.msra.mxu0 %v1603
  %1806 = vmatpush.bf16.msra.mxu0 %v1601
  %1807 = vmatpush.bf16.msra.mxu0 %v1599
  %1808 = vmatpush.bf16.msra.mxu0 %v1597
  %1809 = vmatmul.bf16.gmra.mxu0 %v1771
  %v1810 = vpop.f32.mrf.mxu0
  %v1811 = vadd.f32 0.0, %v1810
  %v1812 = vpop.f32.mrf.mxu0
  %1813 = vdwg.mxu0
  %1814 = vmatpush.bf16.msra.mxu0 %v1627
  %1815 = vmatpush.bf16.msra.mxu0 %v1625
  %1816 = vmatpush.bf16.msra.mxu0 %v1623
  %1817 = vmatpush.bf16.msra.mxu0 %v1621
  %1818 = vmatpush.bf16.msra.mxu0 %v1619
  %1819 = vmatpush.bf16.msra.mxu0 %v1617
  %1820 = vmatpush.bf16.msra.mxu0 %v1615
  %1821 = vmatpush.bf16.msra.mxu0 %v1613
  %1822 = vmatmul.bf16.gmra.mxu0 %v1772
  %v1823 = vpop.f32.mrf.mxu0
  %v1824 = vadd.f32 %v1811, %v1823
  %v1825 = vpop.f32.mrf.mxu0
  %1826 = vdwg.mxu0
  %v1827 = vmul.f32 %v1798, %v1766
  %v1828 = vmul.f32 %v1824, %v1767
  %v1829 = vld [vmem:[%s2] sm:$0x3]
  %s1830 = scalar_lea.vmem %s2, 2
  %v1831 = vld [vmem:[%s1830] sm:$0x3]
  %s1832 = scalar_lea.vmem %s2, 4
  %v1833 = vld [vmem:[%s1832] sm:$0x3]
  %v1834 = vpack.c.bf16 %v1063, %v1063
  %v1835 = vpack.c.bf16 %v1064, %v1064
  %v1836 = vpack.c.bf16 %v1827, %v1827
  %v1837 = vpack.c.bf16 %v1828, %v1828
  %1838 = vset.pattern.permute.xlu0 1
  %1839 = vperm.xlu0 %1838, %v20
  %v1840 = vpop.permute.xlu0 %1839
  %v1843 = vsel %vm224, %v1829, 0
  %v1846 = vsel %vm228, %v1834, 0
  %v1849 = vsel %vm228, %v1835, 0
  %v1852 = vsel %vm228, %v1836, 0
  %v1855 = vsel %vm228, %v1837, 0
  %1857 = vmatpush.bf16.msra.mxu0 0
  %1858 = vmatpush.bf16.msra.mxu0 0
  %1859 = vmatpush.bf16.msra.mxu0 0
  %1860 = vmatpush.bf16.msra.mxu0 0
  %1861 = vmatpush.bf16.msra.mxu0 0
  %1862 = vmatpush.bf16.msra.mxu0 0
  %1863 = vmatpush.bf16.msra.mxu0 0
  %1864 = vmatpush.bf16.msra.mxu0 %v1846
  %1865 = vmatmul.bf16.gmra.mxu0 %v1843
  %v1866 = vpop.f32.mrf.mxu0
  %v1867 = vadd.f32 %v1840, %v1866
  %v1868 = vpop.f32.mrf.mxu0
  %1869 = vdwg.mxu0
  %1870 = vmatpush.bf16.msra.mxu0 0
  %1871 = vmatpush.bf16.msra.mxu0 0
  %1872 = vmatpush.bf16.msra.mxu0 0
  %1873 = vmatpush.bf16.msra.mxu0 0
  %1874 = vmatpush.bf16.msra.mxu0 0
  %1875 = vmatpush.bf16.msra.mxu0 0
  %1876 = vmatpush.bf16.msra.mxu0 0
  %1877 = vmatpush.bf16.msra.mxu0 %v1849
  %1878 = vmatmul.bf16.gmra.mxu0 %v1843
  %v1879 = vpop.f32.mrf.mxu0
  %v1880 = vadd.f32 %v1840, %v1879
  %v1881 = vpop.f32.mrf.mxu0
  %1882 = vdwg.mxu0
  %1883 = vmatpush.bf16.msra.mxu0 0
  %1884 = vmatpush.bf16.msra.mxu0 0
  %1885 = vmatpush.bf16.msra.mxu0 0
  %1886 = vmatpush.bf16.msra.mxu0 0
  %1887 = vmatpush.bf16.msra.mxu0 0
  %1888 = vmatpush.bf16.msra.mxu0 0
  %1889 = vmatpush.bf16.msra.mxu0 0
  %1890 = vmatpush.bf16.msra.mxu0 %v1852
  %1891 = vmatmul.bf16.gmra.mxu0 %v1843
  %v1892 = vpop.f32.mrf.mxu0
  %v1893 = vadd.f32 %v1840, %v1892
  %v1894 = vpop.f32.mrf.mxu0
  %1895 = vdwg.mxu0
  %1896 = vmatpush.bf16.msra.mxu0 0
  %1897 = vmatpush.bf16.msra.mxu0 0
  %1898 = vmatpush.bf16.msra.mxu0 0
  %1899 = vmatpush.bf16.msra.mxu0 0
  %1900 = vmatpush.bf16.msra.mxu0 0
  %1901 = vmatpush.bf16.msra.mxu0 0
  %1902 = vmatpush.bf16.msra.mxu0 0
  %1903 = vmatpush.bf16.msra.mxu0 %v1855
  %1904 = vmatmul.bf16.gmra.mxu0 %v1843
  %v1905 = vpop.f32.mrf.mxu0
  %v1906 = vadd.f32 %v1840, %v1905
  %v1907 = vpop.f32.mrf.mxu0
  %1908 = vdwg.mxu0
  %1909 = vst [vmem:[#allocation1] ss:$2 sm:$0xff] %v18
  %s1910 = scalar_lea.vmem [#allocation1], 16
  %1911 = vst [vmem:[%s1910] ss:$2 sm:$0xff] %v19
  %v1912 = vld.sshfl [vmem:[#allocation1] sm:$0xff pattern:$0x75316420]
  %v1913 = vld.sshfl [vmem:[#allocation1 + $0x8] sm:$0xff pattern:$0x75316420]
  %v1914 = vld.sshfl [vmem:[#allocation1 + $0x10] sm:$0xff pattern:$0x75316420]
  %v1915 = vld.sshfl [vmem:[#allocation1 + $0x18] sm:$0xff pattern:$0x75316420]
  %v1920 = vadd.f32 %v1867, %v1912
  %v1921 = vadd.f32 %v1880, %v1913
  %v1922 = vadd.f32 %v1893, %v1914
  %v1923 = vadd.f32 %v1906, %v1915
  %v1924 = vsel %vm35, %v1920, 0.0
  %v1925 = vrot.slane %v1924, 4
  %v1926 = vadd.f32 %v1924, %v1925
  %v1927 = vrot.slane %v1926, 2
  %v1928 = vadd.f32 %v1926, %v1927
  %v1929 = vrot.slane %v1928, 1
  %v1930 = vadd.f32 %v1928, %v1929
  %v1931 = vsel %vm35, %v1921, 0.0
  %v1932 = vrot.slane %v1931, 4
  %v1933 = vadd.f32 %v1931, %v1932
  %v1934 = vrot.slane %v1933, 2
  %v1935 = vadd.f32 %v1933, %v1934
  %v1936 = vrot.slane %v1935, 1
  %v1937 = vadd.f32 %v1935, %v1936
  %v1938 = vsel %vm35, %v1922, 0.0
  %v1939 = vrot.slane %v1938, 4
  %v1940 = vadd.f32 %v1938, %v1939
  %v1941 = vrot.slane %v1940, 2
  %v1942 = vadd.f32 %v1940, %v1941
  %v1943 = vrot.slane %v1942, 1
  %v1944 = vadd.f32 %v1942, %v1943
  %v1945 = vsel %vm35, %v1923, 0.0
  %v1946 = vrot.slane %v1945, 4
  %v1947 = vadd.f32 %v1945, %v1946
  %v1948 = vrot.slane %v1947, 2
  %v1949 = vadd.f32 %v1947, %v1948
  %v1950 = vrot.slane %v1949, 1
  %v1951 = vadd.f32 %v1949, %v1950
  %v1952 = vmul.f32 %v1930, %v70
  %v1953 = vmul.f32 %v1937, %v70
  %v1954 = vmul.f32 %v1944, %v70
  %v1955 = vmul.f32 %v1951, %v70
  %v1956 = vsub.f32 %v1920, %v1952
  %v1957 = vsub.f32 %v1921, %v1953
  %v1958 = vsub.f32 %v1922, %v1954
  %v1959 = vsub.f32 %v1923, %v1955
  %v1960 = vmul.f32 %v1956, %v1956
  %v1961 = vmul.f32 %v1957, %v1957
  %v1962 = vmul.f32 %v1958, %v1958
  %v1963 = vmul.f32 %v1959, %v1959
  %v1964 = vsel %vm35, %v1960, 0.0
  %v1965 = vrot.slane %v1964, 4
  %v1966 = vadd.f32 %v1964, %v1965
  %v1967 = vrot.slane %v1966, 2
  %v1968 = vadd.f32 %v1966, %v1967
  %v1969 = vrot.slane %v1968, 1
  %v1970 = vadd.f32 %v1968, %v1969
  %v1971 = vsel %vm35, %v1961, 0.0
  %v1972 = vrot.slane %v1971, 4
  %v1973 = vadd.f32 %v1971, %v1972
  %v1974 = vrot.slane %v1973, 2
  %v1975 = vadd.f32 %v1973, %v1974
  %v1976 = vrot.slane %v1975, 1
  %v1977 = vadd.f32 %v1975, %v1976
  %v1978 = vsel %vm35, %v1962, 0.0
  %v1979 = vrot.slane %v1978, 4
  %v1980 = vadd.f32 %v1978, %v1979
  %v1981 = vrot.slane %v1980, 2
  %v1982 = vadd.f32 %v1980, %v1981
  %v1983 = vrot.slane %v1982, 1
  %v1984 = vadd.f32 %v1982, %v1983
  %v1985 = vsel %vm35, %v1963, 0.0
  %v1986 = vrot.slane %v1985, 4
  %v1987 = vadd.f32 %v1985, %v1986
  %v1988 = vrot.slane %v1987, 2
  %v1989 = vadd.f32 %v1987, %v1988
  %v1990 = vrot.slane %v1989, 1
  %v1991 = vadd.f32 %v1989, %v1990
  %v1992 = vmul.f32 %v1970, %v70
  %v1993 = vmul.f32 %v1977, %v70
  %v1994 = vmul.f32 %v1984, %v70
  %v1995 = vmul.f32 %v1991, %v70
  %v1996 = vadd.f32 %v1992, 1e-05
  %v1997 = vadd.f32 %v1993, 1e-05
  %v1998 = vadd.f32 %v1994, 1e-05
  %v1999 = vadd.f32 %v1995, 1e-05
  %v2000 = vrsqrt.pop %v1996
  %v2001 = vmul.f32 %v2000, %v1996
  %v2002 = vmul.f32 %v2001, %v2000
  %v2003 = vmul.f32 0.5, %v2002
  %v2004 = vsub.f32 1.5, %v2003
  %v2005 = vmul.f32 %v2000, %v2004
  %vm2006 = vweird.f32 %v1996
  %vm2007 = vweird.f32 %v2000
  %vm2008 = vmor %vm2006, %vm2007
  %v2009 = vsel %vm2008, %v2000, %v2005
  %v2010 = vrsqrt.pop %v1997
  %v2011 = vmul.f32 %v2010, %v1997
  %v2012 = vmul.f32 %v2011, %v2010
  %v2013 = vmul.f32 0.5, %v2012
  %v2014 = vsub.f32 1.5, %v2013
  %v2015 = vmul.f32 %v2010, %v2014
  %vm2016 = vweird.f32 %v1997
  %vm2017 = vweird.f32 %v2010
  %vm2018 = vmor %vm2016, %vm2017
  %v2019 = vsel %vm2018, %v2010, %v2015
  %v2020 = vrsqrt.pop %v1998
  %v2021 = vmul.f32 %v2020, %v1998
  %v2022 = vmul.f32 %v2021, %v2020
  %v2023 = vmul.f32 0.5, %v2022
  %v2024 = vsub.f32 1.5, %v2023
  %v2025 = vmul.f32 %v2020, %v2024
  %vm2026 = vweird.f32 %v1998
  %vm2027 = vweird.f32 %v2020
  %vm2028 = vmor %vm2026, %vm2027
  %v2029 = vsel %vm2028, %v2020, %v2025
  %v2030 = vrsqrt.pop %v1999
  %v2031 = vmul.f32 %v2030, %v1999
  %v2032 = vmul.f32 %v2031, %v2030
  %v2033 = vmul.f32 0.5, %v2032
  %v2034 = vsub.f32 1.5, %v2033
  %v2035 = vmul.f32 %v2030, %v2034
  %vm2036 = vweird.f32 %v1999
  %vm2037 = vweird.f32 %v2030
  %vm2038 = vmor %vm2036, %vm2037
  %v2039 = vsel %vm2038, %v2030, %v2035
  %v2040 = vmul.f32 %v1956, %v2009
  %v2041 = vmul.f32 %v1957, %v2019
  %v2042 = vmul.f32 %v1958, %v2029
  %v2043 = vmul.f32 %v1959, %v2039
  %v2044 = vpack.c.bf16 %v2040, %v2040
  %v2045 = vpack.c.bf16 %v2041, %v2041
  %v2046 = vpack.c.bf16 %v2042, %v2042
  %v2047 = vpack.c.bf16 %v2043, %v2043
  %2048 = vset.pattern.permute.xlu0 2
  %2049 = vperm.xlu0 %2048, %v20
  %v2050 = vpop.permute.xlu0 %2049
  %v2053 = vsel %vm224, %v1831, 0
  %v2056 = vsel %vm228, %v2044, 0
  %v2059 = vsel %vm228, %v2045, 0
  %v2062 = vsel %vm228, %v2046, 0
  %v2065 = vsel %vm228, %v2047, 0
  %2067 = vmatpush.bf16.msra.mxu0 0
  %2068 = vmatpush.bf16.msra.mxu0 0
  %2069 = vmatpush.bf16.msra.mxu0 0
  %2070 = vmatpush.bf16.msra.mxu0 0
  %2071 = vmatpush.bf16.msra.mxu0 0
  %2072 = vmatpush.bf16.msra.mxu0 0
  %2073 = vmatpush.bf16.msra.mxu0 0
  %2074 = vmatpush.bf16.msra.mxu0 %v2056
  %2075 = vmatmul.bf16.gmra.mxu0 %v2053
  %v2076 = vpop.f32.mrf.mxu0
  %v2077 = vadd.f32 %v2050, %v2076
  %v2078 = vpop.f32.mrf.mxu0
  %2079 = vdwg.mxu0
  %2080 = vmatpush.bf16.msra.mxu0 0
  %2081 = vmatpush.bf16.msra.mxu0 0
  %2082 = vmatpush.bf16.msra.mxu0 0
  %2083 = vmatpush.bf16.msra.mxu0 0
  %2084 = vmatpush.bf16.msra.mxu0 0
  %2085 = vmatpush.bf16.msra.mxu0 0
  %2086 = vmatpush.bf16.msra.mxu0 0
  %2087 = vmatpush.bf16.msra.mxu0 %v2059
  %2088 = vmatmul.bf16.gmra.mxu0 %v2053
  %v2089 = vpop.f32.mrf.mxu0
  %v2090 = vadd.f32 %v2050, %v2089
  %v2091 = vpop.f32.mrf.mxu0
  %2092 = vdwg.mxu0
  %2093 = vmatpush.bf16.msra.mxu0 0
  %2094 = vmatpush.bf16.msra.mxu0 0
  %2095 = vmatpush.bf16.msra.mxu0 0
  %2096 = vmatpush.bf16.msra.mxu0 0
  %2097 = vmatpush.bf16.msra.mxu0 0
  %2098 = vmatpush.bf16.msra.mxu0 0
  %2099 = vmatpush.bf16.msra.mxu0 0
  %2100 = vmatpush.bf16.msra.mxu0 %v2062
  %2101 = vmatmul.bf16.gmra.mxu0 %v2053
  %v2102 = vpop.f32.mrf.mxu0
  %v2103 = vadd.f32 %v2050, %v2102
  %v2104 = vpop.f32.mrf.mxu0
  %2105 = vdwg.mxu0
  %2106 = vmatpush.bf16.msra.mxu0 0
  %2107 = vmatpush.bf16.msra.mxu0 0
  %2108 = vmatpush.bf16.msra.mxu0 0
  %2109 = vmatpush.bf16.msra.mxu0 0
  %2110 = vmatpush.bf16.msra.mxu0 0
  %2111 = vmatpush.bf16.msra.mxu0 0
  %2112 = vmatpush.bf16.msra.mxu0 0
  %2113 = vmatpush.bf16.msra.mxu0 %v2065
  %2114 = vmatmul.bf16.gmra.mxu0 %v2053
  %v2115 = vpop.f32.mrf.mxu0
  %v2116 = vadd.f32 %v2050, %v2115
  %v2117 = vpop.f32.mrf.mxu0
  %2118 = vdwg.mxu0
  %v2119 = vmul.f32 %v2077, %v2077
  %v2120 = vmul.f32 %v2090, %v2090
  %v2121 = vmul.f32 %v2103, %v2103
  %v2122 = vmul.f32 %v2116, %v2116
  %v2123 = vmul.f32 %v2077, %v2119
  %v2124 = vmul.f32 %v2090, %v2120
  %v2125 = vmul.f32 %v2103, %v2121
  %v2126 = vmul.f32 %v2116, %v2122
  %v2127 = vmul.f32 %v2123, 0.044715
  %v2128 = vmul.f32 %v2124, 0.044715
  %v2129 = vmul.f32 %v2125, 0.044715
  %v2130 = vmul.f32 %v2126, 0.044715
  %v2131 = vadd.f32 %v2077, %v2127
  %v2132 = vadd.f32 %v2090, %v2128
  %v2133 = vadd.f32 %v2103, %v2129
  %v2134 = vadd.f32 %v2116, %v2130
  %v2135 = vmul.f32 %v2131, 0.7978846
  %v2136 = vmul.f32 %v2132, 0.7978846
  %v2137 = vmul.f32 %v2133, 0.7978846
  %v2138 = vmul.f32 %v2134, 0.7978846
  %v2139 = vtanh.pop %v2135
  %v2140 = vtanh.pop %v2136
  %v2141 = vtanh.pop %v2137
  %v2142 = vtanh.pop %v2138
  %v2143 = vadd.f32 %v2139, 1.0
  %v2144 = vadd.f32 %v2140, 1.0
  %v2145 = vadd.f32 %v2141, 1.0
  %v2146 = vadd.f32 %v2142, 1.0
  %v2147 = vmul.f32 %v2143, 0.5
  %v2148 = vmul.f32 %v2144, 0.5
  %v2149 = vmul.f32 %v2145, 0.5
  %v2150 = vmul.f32 %v2146, 0.5
  %v2151 = vmul.f32 %v2077, %v2147
  %v2152 = vmul.f32 %v2090, %v2148
  %v2153 = vmul.f32 %v2103, %v2149
  %v2154 = vmul.f32 %v2116, %v2150
  %v2155 = vpack.c.bf16 %v2151, %v2151
  %v2156 = vpack.c.bf16 %v2152, %v2152
  %v2157 = vpack.c.bf16 %v2153, %v2153
  %v2158 = vpack.c.bf16 %v2154, %v2154
  %2159 = vset.pattern.permute.xlu0 3
  %2160 = vperm.xlu0 %2159, %v20
  %v2161 = vpop.permute.xlu0 %2160
  %v2164 = vsel %vm224, %v1833, 0
  %v2167 = vsel %vm228, %v2155, 0
  %v2170 = vsel %vm228, %v2156, 0
  %v2173 = vsel %vm228, %v2157, 0
  %v2176 = vsel %vm228, %v2158, 0
  %2178 = vmatpush.bf16.msra.mxu0 0
  %2179 = vmatpush.bf16.msra.mxu0 0
  %2180 = vmatpush.bf16.msra.mxu0 0
  %2181 = vmatpush.bf16.msra.mxu0 0
  %2182 = vmatpush.bf16.msra.mxu0 0
  %2183 = vmatpush.bf16.msra.mxu0 0
  %2184 = vmatpush.bf16.msra.mxu0 0
  %2185 = vmatpush.bf16.msra.mxu0 %v2167
  %2186 = vmatmul.bf16.gmra.mxu0 %v2164
  %v2187 = vpop.f32.mrf.mxu0
  %v2188 = vadd.f32 %v2161, %v2187
  %v2189 = vpop.f32.mrf.mxu0
  %2190 = vdwg.mxu0
  %2191 = vmatpush.bf16.msra.mxu0 0
  %2192 = vmatpush.bf16.msra.mxu0 0
  %2193 = vmatpush.bf16.msra.mxu0 0
  %2194 = vmatpush.bf16.msra.mxu0 0
  %2195 = vmatpush.bf16.msra.mxu0 0
  %2196 = vmatpush.bf16.msra.mxu0 0
  %2197 = vmatpush.bf16.msra.mxu0 0
  %2198 = vmatpush.bf16.msra.mxu0 %v2170
  %2199 = vmatmul.bf16.gmra.mxu0 %v2164
  %v2200 = vpop.f32.mrf.mxu0
  %v2201 = vadd.f32 %v2161, %v2200
  %v2202 = vpop.f32.mrf.mxu0
  %2203 = vdwg.mxu0
  %2204 = vmatpush.bf16.msra.mxu0 0
  %2205 = vmatpush.bf16.msra.mxu0 0
  %2206 = vmatpush.bf16.msra.mxu0 0
  %2207 = vmatpush.bf16.msra.mxu0 0
  %2208 = vmatpush.bf16.msra.mxu0 0
  %2209 = vmatpush.bf16.msra.mxu0 0
  %2210 = vmatpush.bf16.msra.mxu0 0
  %2211 = vmatpush.bf16.msra.mxu0 %v2173
  %2212 = vmatmul.bf16.gmra.mxu0 %v2164
  %v2213 = vpop.f32.mrf.mxu0
  %v2214 = vadd.f32 %v2161, %v2213
  %v2215 = vpop.f32.mrf.mxu0
  %2216 = vdwg.mxu0
  %2217 = vmatpush.bf16.msra.mxu0 0
  %2218 = vmatpush.bf16.msra.mxu0 0
  %2219 = vmatpush.bf16.msra.mxu0 0
  %2220 = vmatpush.bf16.msra.mxu0 0
  %2221 = vmatpush.bf16.msra.mxu0 0
  %2222 = vmatpush.bf16.msra.mxu0 0
  %2223 = vmatpush.bf16.msra.mxu0 0
  %2224 = vmatpush.bf16.msra.mxu0 %v2176
  %2225 = vmatmul.bf16.gmra.mxu0 %v2164
  %v2226 = vpop.f32.mrf.mxu0
  %v2227 = vadd.f32 %v2161, %v2226
  %v2228 = vpop.f32.mrf.mxu0
  %2229 = vdwg.mxu0
  %v2230 = vadd.f32 %v2188, %v1920
  %v2231 = vadd.f32 %v2201, %v1921
  %v2232 = vadd.f32 %v2214, %v1922
  %v2233 = vadd.f32 %v2227, %v1923
  %v2238 = vrot.slane %v2231, 4
  %v2239 = vrot.slane %v2233, 4
  %v2240 = vsel %vm35, %v2230, %v2238
  %v2241 = vsel %vm35, %v2232, %v2239
  %2244 = vst [vmem:[%s4] sm:$0xff] %v2240
  %2245 = vst [vmem:[%s4 + $0x8] sm:$0xff] %v2241
  // Predicated region
  $region18: #{self_attention_pallas.1} parent=0 // pred_check
    _
  $region19: #{self_attention_pallas.1} parent=0 // pred_check_branch
    %2247 = sbr.rel (0) target = $region21
  $region20: #{self_attention_pallas.1} parent=0 // pred_region
    _
  $region21: #{self_attention_pallas.1} parent=0 // pred_fallthru
    _
  // Predicated region
  $region22: #{self_attention_pallas.1} parent=0 // pred_check
    _
  $region23: #{self_attention_pallas.1} parent=0 // pred_check_branch
    %2249 = sbr.rel (0) target = $region25
  $region24: #{self_attention_pallas.1} parent=0 // pred_region
    _
  $region25: #{self_attention_pallas.1} parent=0 // pred_fallthru
    _

</llo_original>
